<compile_context>
chip_gen: v5e
topology: v5e:2x2
jax: 0.10.0
libtpu: 0.0.40
codegen_flags: <defaults>
</compile_context>

<pallas_src>
import functools

import jax
import jax.numpy as jnp
from jax.experimental import pallas as pl
from jax.experimental.pallas import tpu as pltpu

INPUT_SIZE = 28
HIDDEN = 64          # true hidden size (PyTorch module)
HP = 128             # lane-padded hidden size (one vreg-width slab per gate)
NUM_CLASSES = 10
C_PAD = 128          # lane-dense classifier head width


def lstm_head_kernel(xg_ref, whh_ref, wout_ref, bout_ref, out_ref):
    """LSTM recurrence over time + final Linear on the last hidden state.

    xg_ref  : (T, Bt, 4*HP)  precomputed input projection + bias, time-major,
                             gate slabs ordered (i, f, o, g), each HP lanes wide
    whh_ref : (HP, 4*HP)     hidden->gates weight (zero-padded), same slab order
    wout_ref: (HP, C_PAD)    classifier weight, zero-padded to 128 lanes
    bout_ref: (1, C_PAD)     classifier bias, zero-padded
    out_ref : (Bt, C_PAD)    padded logits
    """
    T, Bt, _ = xg_ref.shape
    whh = whh_ref[...]
    mm_dtype = whh.dtype  # bf16 on the optional fast path, f32 otherwise

    def step(t, h, c):
        # xg_ref[t] is a lane-dense (Bt, 512) VMEM read; the only op on the
        # serial chain is the (Bt,128)x(128,512) MXU matmul + gate math.
        gates = xg_ref[t] + jnp.dot(
            h.astype(mm_dtype), whh, preferred_element_type=jnp.float32
        )  # (Bt, 4*HP), slabs (i, f, o, g) -> all slices vreg-aligned
        sig = jax.nn.sigmoid(gates[:, : 3 * HP])   # one contiguous EUP region
        i_g = sig[:, 0 * HP:1 * HP]
        f_g = sig[:, 1 * HP:2 * HP]
        o_g = sig[:, 2 * HP:3 * HP]
        g_g = jnp.tanh(gates[:, 3 * HP:])
        c_new = f_g * c + i_g * g_g
        h_new = o_g * jnp.tanh(c_new)
        return h_new, c_new

    h = jnp.zeros((Bt, HP), jnp.float32)
    c = jnp.zeros((Bt, HP), jnp.float32)

    if T <= 16:
        # Small T: full static unroll lets the LLO scheduler interleave step
        # t+1's MXU push with step t's EUP/VPU work.
        for t in range(T):
            h, c = step(t, h, c)
    else:
        # Longer sequences: chunk-unrolled loop bounds code size / vreg pressure.
        def body(t, carry):
            return step(t, *carry)
        h, c = jax.lax.fori_loop(0, T, body, (h, c), unroll=4)

    # Lane-dense classifier head (padded lanes of h are exactly zero).
    out_ref[...] = (
        jnp.dot(h, wout_ref[...], preferred_element_type=jnp.float32)
        + bout_ref[...]
    )


@functools.partial(jax.jit, static_argnames=("use_bf16",))
def rnn_forward(x_btd, params, use_bf16=False):
    """x_btd: (B, T, D) float32, batch-first like PyTorch. Returns (B, 10) logits."""
    w_ih, w_hh, b_ih, b_hh, w_out, b_out = params
    B, T, D = x_btd.shape
    H = w_hh.shape[1]
    C = w_out.shape[0]

    # Gate reorder (PyTorch rows are i,f,g,o -> we use i,f,o,g) and pad each
    # gate's rows from H to HP so every gate gets a vreg-aligned 128-lane slab.
    def reorder_and_pad_rows(w):
        i, f, g, o = jnp.split(w, 4, axis=0)
        pad_width = ((0, HP - H),) + tuple((0, 0) for _ in range(w.ndim - 1))
        return jnp.concatenate(
            [jnp.pad(p, pad_width) for p in (i, f, o, g)], axis=0
        )  # (4*HP, ...)

    mm_dtype = jnp.bfloat16 if use_bf16 else jnp.float32

    wih_p = jnp.transpose(reorder_and_pad_rows(w_ih))              # (D, 4*HP) f32
    b_comb = reorder_and_pad_rows(b_ih + b_hh)                     # (4*HP,)  f32
    whh_p = (
        jnp.zeros((HP, 4 * HP), jnp.float32)
        .at[:H, :]
        .set(jnp.transpose(reorder_and_pad_rows(w_hh)))            # (HP, 4*HP)
        .astype(mm_dtype)                                          # weights only
    )
    wout_p = (
        jnp.zeros((HP, C_PAD), jnp.float32)
        .at[:H, :C]
        .set(jnp.transpose(w_out).astype(jnp.float32))
    )
    bout_p = jnp.zeros((1, C_PAD), jnp.float32).at[0, :C].set(
        b_out.astype(jnp.float32)
    )

    # ---- batch tiling: pad to a multiple of B_TILE, grid = cdiv --------------
    B8 = max(8, ((B + 7) // 8) * 8)               # f32 sublane multiple
    if B8 <= 64:
        B_TILE = B8                               # single small tile
    elif B8 <= 256:
        B_TILE = ((B8 // 2 + 7) // 8) * 8         # >=2 tiles (v7x: 2 TensorCores)
    else:
        B_TILE = 128                              # bounded tiles, many grid steps
    Bp = ((B8 + B_TILE - 1) // B_TILE) * B_TILE
    nb = Bp // B_TILE

    x_p = jnp.pad(x_btd.astype(jnp.float32), ((0, Bp - B), (0, 0), (0, 0)))

    # Hoisted input projection + folded bias, emitted directly time-major and
    # lane-dense: (T, Bp, 4*HP). Zero-padded gate columns stay exactly zero.
    xg = jnp.einsum("btd,dg->tbg", x_p, wih_p) + b_comb

    # Advisory cost for the XLA scheduler around the custom call.
    flops = 2 * Bp * T * HP * (4 * HP) + 2 * Bp * HP * C_PAD
    transcendentals = 5 * Bp * T * HP
    bytes_accessed = 4 * (
        T * Bp * 4 * HP + HP * 4 * HP + HP * C_PAD + C_PAD + Bp * C_PAD
    )

    out_padded = pl.pallas_call(
        lstm_head_kernel,
        out_shape=jax.ShapeDtypeStruct((Bp, C_PAD), jnp.float32),
        grid=(nb,),
        in_specs=[
            pl.BlockSpec((T, B_TILE, 4 * HP), lambda i: (0, i, 0)),  # xg tile
            pl.BlockSpec((HP, 4 * HP), lambda i: (0, 0)),            # W_hh (pinned)
            pl.BlockSpec((HP, C_PAD), lambda i: (0, 0)),             # W_out (pinned)
            pl.BlockSpec((1, C_PAD), lambda i: (0, 0)),              # b_out (pinned)
        ],
        out_specs=pl.BlockSpec((B_TILE, C_PAD), lambda i: (i, 0)),
        compiler_params=pltpu.CompilerParams(
            dimension_semantics=("parallel",)),
        cost_estimate=pl.CostEstimate(
            flops=flops,
            transcendentals=transcendentals,
            bytes_accessed=bytes_accessed,
        ),
    )(xg, whh_p, wout_p, bout_p)

    return out_padded[:B, :C]


def init_params(key):
    """Deterministic init matching PyTorch shapes: U(-1/sqrt(H), 1/sqrt(H))."""
    H, D, C = HIDDEN, INPUT_SIZE, NUM_CLASSES
    k = 1.0 / jnp.sqrt(jnp.float32(H))
    keys = jax.random.split(key, 6)
    w_ih = jax.random.uniform(keys[0], (4 * H, D), jnp.float32, -k, k)
    w_hh = jax.random.uniform(keys[1], (4 * H, H), jnp.float32, -k, k)
    b_ih = jax.random.uniform(keys[2], (4 * H,), jnp.float32, -k, k)
    b_hh = jax.random.uniform(keys[3], (4 * H,), jnp.float32, -k, k)
    w_out = jax.random.uniform(keys[4], (C, H), jnp.float32, -k, k)
    b_out = jax.random.uniform(keys[5], (C,), jnp.float32, -k, k)
    return (w_ih, w_hh, b_ih, b_hh, w_out, b_out)


def reference_forward(x_btd, params):
    """Pure-JAX reference with PyTorch LSTM semantics (gate order i, f, g, o)."""
    w_ih, w_hh, b_ih, b_hh, w_out, b_out = params
    B, T, D = x_btd.shape
    H = w_hh.shape[1]
    h = jnp.zeros((B, H), jnp.float32)
    c = jnp.zeros((B, H), jnp.float32)
    for t in range(T):
        g = x_btd[:, t, :] @ w_ih.T + b_ih + h @ w_hh.T + b_hh
        i = jax.nn.sigmoid(g[:, 0 * H:1 * H])
        f = jax.nn.sigmoid(g[:, 1 * H:2 * H])
        gg = jnp.tanh(g[:, 2 * H:3 * H])
        o = jax.nn.sigmoid(g[:, 3 * H:4 * H])
        c = f * c + i * gg
        h = o * jnp.tanh(c)
    return h @ w_out.T + b_out


if __name__ == "__main__":
    key = jax.random.PRNGKey(0)
    k_params, k_x = jax.random.split(key)

    B, T = 2, 8  # small batch / sequence length; feature dim fixed at 28
    params = init_params(k_params)
    x = jax.random.normal(k_x, (B, T, INPUT_SIZE), jnp.float32)

    logits = rnn_forward(x, params)  # exact f32 path
    jax.block_until_ready(logits)

    ref = reference_forward(x, params)
    assert logits.shape == (B, NUM_CLASSES)
    assert jnp.allclose(logits, ref, atol=1e-4, rtol=1e-4)

    print("KERNEL_OK")
</pallas_src>

<mosaic_0001>
module attributes {stable_mosaic.version = 11 : i64} {
  func.func @lstm_head_kernel(%arg0: i32, %arg1: memref<8x8x512xf32, #tpu.memory_space<vmem>>, %arg2: memref<128x512xf32, #tpu.memory_space<vmem>>, %arg3: memref<128x128xf32, #tpu.memory_space<vmem>>, %arg4: memref<1x128xf32, #tpu.memory_space<vmem>>, %arg5: memref<8x128xf32, #tpu.memory_space<vmem>>) attributes {dimension_semantics = [#tpu.dimension_semantics<parallel>], iteration_bounds = array<i64: 1>, scalar_prefetch = 0 : i64, scratch_operands = 0 : i64, tpu.core_type = #tpu.core_type<tc>, window_params = [{transform_indices = @transform_0, window_bounds = array<i64: 8, 8, 512>}, {pipeline_mode = #tpu.pipeline_mode<synchronous>, transform_indices = @transform_1, window_bounds = array<i64: 128, 512>}, {pipeline_mode = #tpu.pipeline_mode<synchronous>, transform_indices = @transform_2, window_bounds = array<i64: 128, 128>}, {pipeline_mode = #tpu.pipeline_mode<synchronous>, transform_indices = @transform_3, window_bounds = array<i64: 1, 128>}, {transform_indices = @transform_4, window_bounds = array<i64: 8, 128>}]} {
    %c0 = arith.constant 0 : index
    %c0_0 = arith.constant 0 : index
    %0 = vector.load %arg2[%c0, %c0_0] : memref<128x512xf32, #tpu.memory_space<vmem>>, vector<128x512xf32>
    %cst = arith.constant 0.000000e+00 : f32
    %1 = vector.broadcast %cst : f32 to vector<8x128xf32>
    %cst_1 = arith.constant 0.000000e+00 : f32
    %2 = vector.broadcast %cst_1 : f32 to vector<8x128xf32>
    %c0_2 = arith.constant 0 : index
    %c0_3 = arith.constant 0 : index
    %c0_4 = arith.constant 0 : index
    %3 = vector.load %arg1[%c0_2, %c0_3, %c0_4] : memref<8x8x512xf32, #tpu.memory_space<vmem>>, vector<1x8x512xf32>
    %4 = vector.shape_cast %3 : vector<1x8x512xf32> to vector<8x512xf32>
    %cst_5 = arith.constant dense<0.000000e+00> : vector<8x512xf32>
    %5 = tpu.matmul %1, %0, %cst_5 {dimension_numbers = #tpu.dot_dimension_numbers<[1], [0], [0], [1], [0, 0, 1, 1], [], []>} : vector<8x128xf32>, vector<128x512xf32>, vector<8x512xf32> -> vector<8x512xf32>
    %6 = arith.addf %4, %5 : vector<8x512xf32>
    %7 = vector.extract_strided_slice %6 {offsets = [0, 0], sizes = [8, 384], strides = [1, 1]} : vector<8x512xf32> to vector<8x384xf32>
    %8 = arith.negf %7 : vector<8x384xf32>
    %9 = math.exp %8 : vector<8x384xf32>
    %cst_6 = arith.constant 1.000000e+00 : f32
    %10 = vector.broadcast %cst_6 : f32 to vector<8x384xf32>
    %11 = arith.addf %10, %9 : vector<8x384xf32>
    %12 = arith.divf %10, %11 : vector<8x384xf32>
    %13 = vector.extract_strided_slice %12 {offsets = [0, 0], sizes = [8, 128], strides = [1, 1]} : vector<8x384xf32> to vector<8x128xf32>
    %14 = vector.extract_strided_slice %12 {offsets = [0, 128], sizes = [8, 128], strides = [1, 1]} : vector<8x384xf32> to vector<8x128xf32>
    %15 = vector.extract_strided_slice %12 {offsets = [0, 256], sizes = [8, 128], strides = [1, 1]} : vector<8x384xf32> to vector<8x128xf32>
    %16 = vector.extract_strided_slice %6 {offsets = [0, 384], sizes = [8, 128], strides = [1, 1]} : vector<8x512xf32> to vector<8x128xf32>
    %17 = math.tanh %16 : vector<8x128xf32>
    %18 = arith.mulf %14, %2 : vector<8x128xf32>
    %19 = arith.mulf %13, %17 : vector<8x128xf32>
    %20 = arith.addf %18, %19 : vector<8x128xf32>
    %21 = math.tanh %20 : vector<8x128xf32>
    %22 = arith.mulf %15, %21 : vector<8x128xf32>
    %c1 = arith.constant 1 : index
    %c0_7 = arith.constant 0 : index
    %c0_8 = arith.constant 0 : index
    %23 = vector.load %arg1[%c1, %c0_7, %c0_8] : memref<8x8x512xf32, #tpu.memory_space<vmem>>, vector<1x8x512xf32>
    %24 = vector.shape_cast %23 : vector<1x8x512xf32> to vector<8x512xf32>
    %cst_9 = arith.constant dense<0.000000e+00> : vector<8x512xf32>
    %25 = tpu.matmul %22, %0, %cst_9 {dimension_numbers = #tpu.dot_dimension_numbers<[1], [0], [0], [1], [0, 0, 1, 1], [], []>} : vector<8x128xf32>, vector<128x512xf32>, vector<8x512xf32> -> vector<8x512xf32>
    %26 = arith.addf %24, %25 : vector<8x512xf32>
    %27 = vector.extract_strided_slice %26 {offsets = [0, 0], sizes = [8, 384], strides = [1, 1]} : vector<8x512xf32> to vector<8x384xf32>
    %28 = arith.negf %27 : vector<8x384xf32>
    %29 = math.exp %28 : vector<8x384xf32>
    %cst_10 = arith.constant 1.000000e+00 : f32
    %30 = vector.broadcast %cst_10 : f32 to vector<8x384xf32>
    %31 = arith.addf %30, %29 : vector<8x384xf32>
    %32 = arith.divf %30, %31 : vector<8x384xf32>
    %33 = vector.extract_strided_slice %32 {offsets = [0, 0], sizes = [8, 128], strides = [1, 1]} : vector<8x384xf32> to vector<8x128xf32>
    %34 = vector.extract_strided_slice %32 {offsets = [0, 128], sizes = [8, 128], strides = [1, 1]} : vector<8x384xf32> to vector<8x128xf32>
    %35 = vector.extract_strided_slice %32 {offsets = [0, 256], sizes = [8, 128], strides = [1, 1]} : vector<8x384xf32> to vector<8x128xf32>
    %36 = vector.extract_strided_slice %26 {offsets = [0, 384], sizes = [8, 128], strides = [1, 1]} : vector<8x512xf32> to vector<8x128xf32>
    %37 = math.tanh %36 : vector<8x128xf32>
    %38 = arith.mulf %34, %20 : vector<8x128xf32>
    %39 = arith.mulf %33, %37 : vector<8x128xf32>
    %40 = arith.addf %38, %39 : vector<8x128xf32>
    %41 = math.tanh %40 : vector<8x128xf32>
    %42 = arith.mulf %35, %41 : vector<8x128xf32>
    %c2 = arith.constant 2 : index
    %c0_11 = arith.constant 0 : index
    %c0_12 = arith.constant 0 : index
    %43 = vector.load %arg1[%c2, %c0_11, %c0_12] : memref<8x8x512xf32, #tpu.memory_space<vmem>>, vector<1x8x512xf32>
    %44 = vector.shape_cast %43 : vector<1x8x512xf32> to vector<8x512xf32>
    %cst_13 = arith.constant dense<0.000000e+00> : vector<8x512xf32>
    %45 = tpu.matmul %42, %0, %cst_13 {dimension_numbers = #tpu.dot_dimension_numbers<[1], [0], [0], [1], [0, 0, 1, 1], [], []>} : vector<8x128xf32>, vector<128x512xf32>, vector<8x512xf32> -> vector<8x512xf32>
    %46 = arith.addf %44, %45 : vector<8x512xf32>
    %47 = vector.extract_strided_slice %46 {offsets = [0, 0], sizes = [8, 384], strides = [1, 1]} : vector<8x512xf32> to vector<8x384xf32>
    %48 = arith.negf %47 : vector<8x384xf32>
    %49 = math.exp %48 : vector<8x384xf32>
    %cst_14 = arith.constant 1.000000e+00 : f32
    %50 = vector.broadcast %cst_14 : f32 to vector<8x384xf32>
    %51 = arith.addf %50, %49 : vector<8x384xf32>
    %52 = arith.divf %50, %51 : vector<8x384xf32>
    %53 = vector.extract_strided_slice %52 {offsets = [0, 0], sizes = [8, 128], strides = [1, 1]} : vector<8x384xf32> to vector<8x128xf32>
    %54 = vector.extract_strided_slice %52 {offsets = [0, 128], sizes = [8, 128], strides = [1, 1]} : vector<8x384xf32> to vector<8x128xf32>
    %55 = vector.extract_strided_slice %52 {offsets = [0, 256], sizes = [8, 128], strides = [1, 1]} : vector<8x384xf32> to vector<8x128xf32>
    %56 = vector.extract_strided_slice %46 {offsets = [0, 384], sizes = [8, 128], strides = [1, 1]} : vector<8x512xf32> to vector<8x128xf32>
    %57 = math.tanh %56 : vector<8x128xf32>
    %58 = arith.mulf %54, %40 : vector<8x128xf32>
    %59 = arith.mulf %53, %57 : vector<8x128xf32>
    %60 = arith.addf %58, %59 : vector<8x128xf32>
    %61 = math.tanh %60 : vector<8x128xf32>
    %62 = arith.mulf %55, %61 : vector<8x128xf32>
    %c3 = arith.constant 3 : index
    %c0_15 = arith.constant 0 : index
    %c0_16 = arith.constant 0 : index
    %63 = vector.load %arg1[%c3, %c0_15, %c0_16] : memref<8x8x512xf32, #tpu.memory_space<vmem>>, vector<1x8x512xf32>
    %64 = vector.shape_cast %63 : vector<1x8x512xf32> to vector<8x512xf32>
    %cst_17 = arith.constant dense<0.000000e+00> : vector<8x512xf32>
    %65 = tpu.matmul %62, %0, %cst_17 {dimension_numbers = #tpu.dot_dimension_numbers<[1], [0], [0], [1], [0, 0, 1, 1], [], []>} : vector<8x128xf32>, vector<128x512xf32>, vector<8x512xf32> -> vector<8x512xf32>
    %66 = arith.addf %64, %65 : vector<8x512xf32>
    %67 = vector.extract_strided_slice %66 {offsets = [0, 0], sizes = [8, 384], strides = [1, 1]} : vector<8x512xf32> to vector<8x384xf32>
    %68 = arith.negf %67 : vector<8x384xf32>
    %69 = math.exp %68 : vector<8x384xf32>
    %cst_18 = arith.constant 1.000000e+00 : f32
    %70 = vector.broadcast %cst_18 : f32 to vector<8x384xf32>
    %71 = arith.addf %70, %69 : vector<8x384xf32>
    %72 = arith.divf %70, %71 : vector<8x384xf32>
    %73 = vector.extract_strided_slice %72 {offsets = [0, 0], sizes = [8, 128], strides = [1, 1]} : vector<8x384xf32> to vector<8x128xf32>
    %74 = vector.extract_strided_slice %72 {offsets = [0, 128], sizes = [8, 128], strides = [1, 1]} : vector<8x384xf32> to vector<8x128xf32>
    %75 = vector.extract_strided_slice %72 {offsets = [0, 256], sizes = [8, 128], strides = [1, 1]} : vector<8x384xf32> to vector<8x128xf32>
    %76 = vector.extract_strided_slice %66 {offsets = [0, 384], sizes = [8, 128], strides = [1, 1]} : vector<8x512xf32> to vector<8x128xf32>
    %77 = math.tanh %76 : vector<8x128xf32>
    %78 = arith.mulf %74, %60 : vector<8x128xf32>
    %79 = arith.mulf %73, %77 : vector<8x128xf32>
    %80 = arith.addf %78, %79 : vector<8x128xf32>
    %81 = math.tanh %80 : vector<8x128xf32>
    %82 = arith.mulf %75, %81 : vector<8x128xf32>
    %c4 = arith.constant 4 : index
    %c0_19 = arith.constant 0 : index
    %c0_20 = arith.constant 0 : index
    %83 = vector.load %arg1[%c4, %c0_19, %c0_20] : memref<8x8x512xf32, #tpu.memory_space<vmem>>, vector<1x8x512xf32>
    %84 = vector.shape_cast %83 : vector<1x8x512xf32> to vector<8x512xf32>
    %cst_21 = arith.constant dense<0.000000e+00> : vector<8x512xf32>
    %85 = tpu.matmul %82, %0, %cst_21 {dimension_numbers = #tpu.dot_dimension_numbers<[1], [0], [0], [1], [0, 0, 1, 1], [], []>} : vector<8x128xf32>, vector<128x512xf32>, vector<8x512xf32> -> vector<8x512xf32>
    %86 = arith.addf %84, %85 : vector<8x512xf32>
    %87 = vector.extract_strided_slice %86 {offsets = [0, 0], sizes = [8, 384], strides = [1, 1]} : vector<8x512xf32> to vector<8x384xf32>
    %88 = arith.negf %87 : vector<8x384xf32>
    %89 = math.exp %88 : vector<8x384xf32>
    %cst_22 = arith.constant 1.000000e+00 : f32
    %90 = vector.broadcast %cst_22 : f32 to vector<8x384xf32>
    %91 = arith.addf %90, %89 : vector<8x384xf32>
    %92 = arith.divf %90, %91 : vector<8x384xf32>
    %93 = vector.extract_strided_slice %92 {offsets = [0, 0], sizes = [8, 128], strides = [1, 1]} : vector<8x384xf32> to vector<8x128xf32>
    %94 = vector.extract_strided_slice %92 {offsets = [0, 128], sizes = [8, 128], strides = [1, 1]} : vector<8x384xf32> to vector<8x128xf32>
    %95 = vector.extract_strided_slice %92 {offsets = [0, 256], sizes = [8, 128], strides = [1, 1]} : vector<8x384xf32> to vector<8x128xf32>
    %96 = vector.extract_strided_slice %86 {offsets = [0, 384], sizes = [8, 128], strides = [1, 1]} : vector<8x512xf32> to vector<8x128xf32>
    %97 = math.tanh %96 : vector<8x128xf32>
    %98 = arith.mulf %94, %80 : vector<8x128xf32>
    %99 = arith.mulf %93, %97 : vector<8x128xf32>
    %100 = arith.addf %98, %99 : vector<8x128xf32>
    %101 = math.tanh %100 : vector<8x128xf32>
    %102 = arith.mulf %95, %101 : vector<8x128xf32>
    %c5 = arith.constant 5 : index
    %c0_23 = arith.constant 0 : index
    %c0_24 = arith.constant 0 : index
    %103 = vector.load %arg1[%c5, %c0_23, %c0_24] : memref<8x8x512xf32, #tpu.memory_space<vmem>>, vector<1x8x512xf32>
    %104 = vector.shape_cast %103 : vector<1x8x512xf32> to vector<8x512xf32>
    %cst_25 = arith.constant dense<0.000000e+00> : vector<8x512xf32>
    %105 = tpu.matmul %102, %0, %cst_25 {dimension_numbers = #tpu.dot_dimension_numbers<[1], [0], [0], [1], [0, 0, 1, 1], [], []>} : vector<8x128xf32>, vector<128x512xf32>, vector<8x512xf32> -> vector<8x512xf32>
    %106 = arith.addf %104, %105 : vector<8x512xf32>
    %107 = vector.extract_strided_slice %106 {offsets = [0, 0], sizes = [8, 384], strides = [1, 1]} : vector<8x512xf32> to vector<8x384xf32>
    %108 = arith.negf %107 : vector<8x384xf32>
    %109 = math.exp %108 : vector<8x384xf32>
    %cst_26 = arith.constant 1.000000e+00 : f32
    %110 = vector.broadcast %cst_26 : f32 to vector<8x384xf32>
    %111 = arith.addf %110, %109 : vector<8x384xf32>
    %112 = arith.divf %110, %111 : vector<8x384xf32>
    %113 = vector.extract_strided_slice %112 {offsets = [0, 0], sizes = [8, 128], strides = [1, 1]} : vector<8x384xf32> to vector<8x128xf32>
    %114 = vector.extract_strided_slice %112 {offsets = [0, 128], sizes = [8, 128], strides = [1, 1]} : vector<8x384xf32> to vector<8x128xf32>
    %115 = vector.extract_strided_slice %112 {offsets = [0, 256], sizes = [8, 128], strides = [1, 1]} : vector<8x384xf32> to vector<8x128xf32>
    %116 = vector.extract_strided_slice %106 {offsets = [0, 384], sizes = [8, 128], strides = [1, 1]} : vector<8x512xf32> to vector<8x128xf32>
    %117 = math.tanh %116 : vector<8x128xf32>
    %118 = arith.mulf %114, %100 : vector<8x128xf32>
    %119 = arith.mulf %113, %117 : vector<8x128xf32>
    %120 = arith.addf %118, %119 : vector<8x128xf32>
    %121 = math.tanh %120 : vector<8x128xf32>
    %122 = arith.mulf %115, %121 : vector<8x128xf32>
    %c6 = arith.constant 6 : index
    %c0_27 = arith.constant 0 : index
    %c0_28 = arith.constant 0 : index
    %123 = vector.load %arg1[%c6, %c0_27, %c0_28] : memref<8x8x512xf32, #tpu.memory_space<vmem>>, vector<1x8x512xf32>
    %124 = vector.shape_cast %123 : vector<1x8x512xf32> to vector<8x512xf32>
    %cst_29 = arith.constant dense<0.000000e+00> : vector<8x512xf32>
    %125 = tpu.matmul %122, %0, %cst_29 {dimension_numbers = #tpu.dot_dimension_numbers<[1], [0], [0], [1], [0, 0, 1, 1], [], []>} : vector<8x128xf32>, vector<128x512xf32>, vector<8x512xf32> -> vector<8x512xf32>
    %126 = arith.addf %124, %125 : vector<8x512xf32>
    %127 = vector.extract_strided_slice %126 {offsets = [0, 0], sizes = [8, 384], strides = [1, 1]} : vector<8x512xf32> to vector<8x384xf32>
    %128 = arith.negf %127 : vector<8x384xf32>
    %129 = math.exp %128 : vector<8x384xf32>
    %cst_30 = arith.constant 1.000000e+00 : f32
    %130 = vector.broadcast %cst_30 : f32 to vector<8x384xf32>
    %131 = arith.addf %130, %129 : vector<8x384xf32>
    %132 = arith.divf %130, %131 : vector<8x384xf32>
    %133 = vector.extract_strided_slice %132 {offsets = [0, 0], sizes = [8, 128], strides = [1, 1]} : vector<8x384xf32> to vector<8x128xf32>
    %134 = vector.extract_strided_slice %132 {offsets = [0, 128], sizes = [8, 128], strides = [1, 1]} : vector<8x384xf32> to vector<8x128xf32>
    %135 = vector.extract_strided_slice %132 {offsets = [0, 256], sizes = [8, 128], strides = [1, 1]} : vector<8x384xf32> to vector<8x128xf32>
    %136 = vector.extract_strided_slice %126 {offsets = [0, 384], sizes = [8, 128], strides = [1, 1]} : vector<8x512xf32> to vector<8x128xf32>
    %137 = math.tanh %136 : vector<8x128xf32>
    %138 = arith.mulf %134, %120 : vector<8x128xf32>
    %139 = arith.mulf %133, %137 : vector<8x128xf32>
    %140 = arith.addf %138, %139 : vector<8x128xf32>
    %141 = math.tanh %140 : vector<8x128xf32>
    %142 = arith.mulf %135, %141 : vector<8x128xf32>
    %c7 = arith.constant 7 : index
    %c0_31 = arith.constant 0 : index
    %c0_32 = arith.constant 0 : index
    %143 = vector.load %arg1[%c7, %c0_31, %c0_32] : memref<8x8x512xf32, #tpu.memory_space<vmem>>, vector<1x8x512xf32>
    %144 = vector.shape_cast %143 : vector<1x8x512xf32> to vector<8x512xf32>
    %cst_33 = arith.constant dense<0.000000e+00> : vector<8x512xf32>
    %145 = tpu.matmul %142, %0, %cst_33 {dimension_numbers = #tpu.dot_dimension_numbers<[1], [0], [0], [1], [0, 0, 1, 1], [], []>} : vector<8x128xf32>, vector<128x512xf32>, vector<8x512xf32> -> vector<8x512xf32>
    %146 = arith.addf %144, %145 : vector<8x512xf32>
    %147 = vector.extract_strided_slice %146 {offsets = [0, 0], sizes = [8, 384], strides = [1, 1]} : vector<8x512xf32> to vector<8x384xf32>
    %148 = arith.negf %147 : vector<8x384xf32>
    %149 = math.exp %148 : vector<8x384xf32>
    %cst_34 = arith.constant 1.000000e+00 : f32
    %150 = vector.broadcast %cst_34 : f32 to vector<8x384xf32>
    %151 = arith.addf %150, %149 : vector<8x384xf32>
    %152 = arith.divf %150, %151 : vector<8x384xf32>
    %153 = vector.extract_strided_slice %152 {offsets = [0, 0], sizes = [8, 128], strides = [1, 1]} : vector<8x384xf32> to vector<8x128xf32>
    %154 = vector.extract_strided_slice %152 {offsets = [0, 128], sizes = [8, 128], strides = [1, 1]} : vector<8x384xf32> to vector<8x128xf32>
    %155 = vector.extract_strided_slice %152 {offsets = [0, 256], sizes = [8, 128], strides = [1, 1]} : vector<8x384xf32> to vector<8x128xf32>
    %156 = vector.extract_strided_slice %146 {offsets = [0, 384], sizes = [8, 128], strides = [1, 1]} : vector<8x512xf32> to vector<8x128xf32>
    %157 = math.tanh %156 : vector<8x128xf32>
    %158 = arith.mulf %154, %140 : vector<8x128xf32>
    %159 = arith.mulf %153, %157 : vector<8x128xf32>
    %160 = arith.addf %158, %159 : vector<8x128xf32>
    %161 = math.tanh %160 : vector<8x128xf32>
    %162 = arith.mulf %155, %161 : vector<8x128xf32>
    %c0_35 = arith.constant 0 : index
    %c0_36 = arith.constant 0 : index
    %163 = vector.load %arg3[%c0_35, %c0_36] : memref<128x128xf32, #tpu.memory_space<vmem>>, vector<128x128xf32>
    %cst_37 = arith.constant dense<0.000000e+00> : vector<8x128xf32>
    %164 = tpu.matmul %162, %163, %cst_37 {dimension_numbers = #tpu.dot_dimension_numbers<[1], [0], [0], [1], [0, 0, 1, 1], [], []>} : vector<8x128xf32>, vector<128x128xf32>, vector<8x128xf32> -> vector<8x128xf32>
    %c0_38 = arith.constant 0 : index
    %c0_39 = arith.constant 0 : index
    %165 = vector.load %arg4[%c0_38, %c0_39] : memref<1x128xf32, #tpu.memory_space<vmem>>, vector<1x128xf32>
    %166 = vector.broadcast %165 : vector<1x128xf32> to vector<8x128xf32>
    %167 = arith.addf %164, %166 : vector<8x128xf32>
    %c0_40 = arith.constant 0 : index
    %c0_41 = arith.constant 0 : index
    %168 = vector.load %arg5[%c0_40, %c0_41] : memref<8x128xf32, #tpu.memory_space<vmem>>, vector<8x128xf32>
    tpu.vector_store %arg5[%c0_40, %c0_41], %167 {strides = array<i32>} : memref<8x128xf32, #tpu.memory_space<vmem>>, vector<8x128xf32>,
    return
  }
  func.func @transform_0(%arg0: i32) -> (i32, i32, i32) {
    %c0_i32 = arith.constant 0 : i32
    %c0_i32_0 = arith.constant 0 : i32
    %c0_i32_1 = arith.constant 0 : i32
    return %c0_i32, %arg0, %c0_i32_0 : i32, i32, i32
  }
  func.func @transform_1(%arg0: i32) -> (i32, i32) {
    %c0_i32 = arith.constant 0 : i32
    %c0_i32_0 = arith.constant 0 : i32
    %c0_i32_1 = arith.constant 0 : i32
    return %c0_i32, %c0_i32_0 : i32, i32
  }
  func.func @transform_2(%arg0: i32) -> (i32, i32) {
    %c0_i32 = arith.constant 0 : i32
    %c0_i32_0 = arith.constant 0 : i32
    %c0_i32_1 = arith.constant 0 : i32
    return %c0_i32, %c0_i32_0 : i32, i32
  }
  func.func @transform_3(%arg0: i32) -> (i32, i32) {
    %c0_i32 = arith.constant 0 : i32
    %c0_i32_0 = arith.constant 0 : i32
    %c0_i32_1 = arith.constant 0 : i32
    return %c0_i32, %c0_i32_0 : i32, i32
  }
  func.func @transform_4(%arg0: i32) -> (i32, i32) {
    %c0_i32 = arith.constant 0 : i32
    %c0_i32_0 = arith.constant 0 : i32
    return %arg0, %c0_i32 : i32, i32
  }
}

</mosaic_0001>

<llo_original>
// kernel: rnn_forward.1
$region0: #{rnn_forward.1}
  #allocation0 [shape = 'u32[]', space=smem, size = 0x4, offset = 0x4, fixed_abs, tag = 'smem constant byte address 0x4 - core index']
  #allocation1 [shape = 'u32[72,128]{1,0:T(1,128)}', space=vmem, size = 0x9000, scoped, tag = 'internal scratch']
  %s0 = inlined_call_operand.vmem [shape: f32[8,8,512], index: 0, kind: input, shape index: {}]
  %s1 = inlined_call_operand.vmem [shape: f32[128,512], index: 1, kind: input, shape index: {}]
  %s2 = inlined_call_operand.vmem [shape: f32[128,128], index: 2, kind: input, shape index: {}]
  %s3 = inlined_call_operand.vmem [shape: f32[1,128], index: 3, kind: input, shape index: {}]
  %s4 = inlined_call_operand.vmem [shape: f32[8,128], index: 4, kind: output, shape index: {}]
  %s5 = sld [smem:[#allocation0]]
  $region26: #{rnn_forward.1} parent=0
    _
  %s7 = ssub.s32 1, %s5
  %s8 = scalar_select 0, %s7, %s5
  // Predicated region
  $region2: #{rnn_forward.1} parent=0 // pred_check
    _
  $region3: #{rnn_forward.1} parent=0 // pred_check_branch
    %10 = sbr.rel (0) target = $region5
  $region4: #{rnn_forward.1} parent=0 // pred_region
    _
  $region5: #{rnn_forward.1} parent=0 // pred_fallthru
    _
  // Predicated region
  $region6: #{rnn_forward.1} parent=0 // pred_check
    _
  $region7: #{rnn_forward.1} parent=0 // pred_check_branch
    %12 = sbr.rel (0) target = $region9
  $region8: #{rnn_forward.1} parent=0 // pred_region
    _
  $region9: #{rnn_forward.1} parent=0 // pred_fallthru
    _
  // Predicated region
  $region10: #{rnn_forward.1} parent=0 // pred_check
    _
  $region11: #{rnn_forward.1} parent=0 // pred_check_branch
    %14 = sbr.rel (0) target = $region13
  $region12: #{rnn_forward.1} parent=0 // pred_region
    _
  $region13: #{rnn_forward.1} parent=0 // pred_fallthru
    _
  // Predicated region
  $region14: #{rnn_forward.1} parent=0 // pred_check
    _
  $region15: #{rnn_forward.1} parent=0 // pred_check_branch
    %16 = sbr.rel (0) target = $region17
  $region16: #{rnn_forward.1} parent=0 // pred_region
    _
  $region17: #{rnn_forward.1} parent=0 // pred_fallthru
    _
  %v17 = vld [vmem:[%s1] sm:$0xff]
  %v18 = vld [vmem:[%s1 + $0x8] sm:$0xff]
  %v19 = vld [vmem:[%s1 + $0x10] sm:$0xff]
  %v20 = vld [vmem:[%s1 + $0x18] sm:$0xff]
  %v21 = vld [vmem:[%s1 + $0x20] sm:$0xff]
  %v22 = vld [vmem:[%s1 + $0x28] sm:$0xff]
  %v23 = vld [vmem:[%s1 + $0x30] sm:$0xff]
  %v24 = vld [vmem:[%s1 + $0x38] sm:$0xff]
  %v25 = vld [vmem:[%s1 + $0x40] sm:$0xff]
  %v26 = vld [vmem:[%s1 + $0x48] sm:$0xff]
  %v27 = vld [vmem:[%s1 + $0x50] sm:$0xff]
  %v28 = vld [vmem:[%s1 + $0x58] sm:$0xff]
  %v29 = vld [vmem:[%s1 + $0x60] sm:$0xff]
  %v30 = vld [vmem:[%s1 + $0x68] sm:$0xff]
  %v31 = vld [vmem:[%s1 + $0x70] sm:$0xff]
  %v32 = vld [vmem:[%s1 + $0x78] sm:$0xff]
  %v33 = vld [vmem:[%s1 + $0x80] sm:$0xff]
  %v34 = vld [vmem:[%s1 + $0x88] sm:$0xff]
  %v35 = vld [vmem:[%s1 + $0x90] sm:$0xff]
  %v36 = vld [vmem:[%s1 + $0x98] sm:$0xff]
  %v37 = vld [vmem:[%s1 + $0xa0] sm:$0xff]
  %v38 = vld [vmem:[%s1 + $0xa8] sm:$0xff]
  %v39 = vld [vmem:[%s1 + $0xb0] sm:$0xff]
  %v40 = vld [vmem:[%s1 + $0xb8] sm:$0xff]
  %v41 = vld [vmem:[%s1 + $0xc0] sm:$0xff]
  %v42 = vld [vmem:[%s1 + $0xc8] sm:$0xff]
  %v43 = vld [vmem:[%s1 + $0xd0] sm:$0xff]
  %v44 = vld [vmem:[%s1 + $0xd8] sm:$0xff]
  %v45 = vld [vmem:[%s1 + $0xe0] sm:$0xff]
  %v46 = vld [vmem:[%s1 + $0xe8] sm:$0xff]
  %v47 = vld [vmem:[%s1 + $0xf0] sm:$0xff]
  %v48 = vld [vmem:[%s1 + $0xf8] sm:$0xff]
  %v49 = vld [vmem:[%s1 + $0x100] sm:$0xff]
  %v50 = vld [vmem:[%s1 + $0x108] sm:$0xff]
  %v51 = vld [vmem:[%s1 + $0x110] sm:$0xff]
  %v52 = vld [vmem:[%s1 + $0x118] sm:$0xff]
  %v53 = vld [vmem:[%s1 + $0x120] sm:$0xff]
  %v54 = vld [vmem:[%s1 + $0x128] sm:$0xff]
  %v55 = vld [vmem:[%s1 + $0x130] sm:$0xff]
  %v56 = vld [vmem:[%s1 + $0x138] sm:$0xff]
  %v57 = vld [vmem:[%s1 + $0x140] sm:$0xff]
  %v58 = vld [vmem:[%s1 + $0x148] sm:$0xff]
  %v59 = vld [vmem:[%s1 + $0x150] sm:$0xff]
  %v60 = vld [vmem:[%s1 + $0x158] sm:$0xff]
  %v61 = vld [vmem:[%s1 + $0x160] sm:$0xff]
  %v62 = vld [vmem:[%s1 + $0x168] sm:$0xff]
  %v63 = vld [vmem:[%s1 + $0x170] sm:$0xff]
  %v64 = vld [vmem:[%s1 + $0x178] sm:$0xff]
  %v65 = vld [vmem:[%s1 + $0x180] sm:$0xff]
  %v66 = vld [vmem:[%s1 + $0x188] sm:$0xff]
  %v67 = vld [vmem:[%s1 + $0x190] sm:$0xff]
  %v68 = vld [vmem:[%s1 + $0x198] sm:$0xff]
  %v69 = vld [vmem:[%s1 + $0x1a0] sm:$0xff]
  %v70 = vld [vmem:[%s1 + $0x1a8] sm:$0xff]
  %v71 = vld [vmem:[%s1 + $0x1b0] sm:$0xff]
  %v72 = vld [vmem:[%s1 + $0x1b8] sm:$0xff]
  %v73 = vld [vmem:[%s1 + $0x1c0] sm:$0xff]
  %v74 = vld [vmem:[%s1 + $0x1c8] sm:$0xff]
  %v75 = vld [vmem:[%s1 + $0x1d0] sm:$0xff]
  %v76 = vld [vmem:[%s1 + $0x1d8] sm:$0xff]
  %v77 = vld [vmem:[%s1 + $0x1e0] sm:$0xff]
  %v78 = vld [vmem:[%s1 + $0x1e8] sm:$0xff]
  %v79 = vld [vmem:[%s1 + $0x1f0] sm:$0xff]
  %v80 = vld [vmem:[%s1 + $0x1f8] sm:$0xff]
  %v81 = vld [vmem:[%s0] sm:$0xff]
  %v82 = vld [vmem:[%s0 + $0x8] sm:$0xff]
  %v83 = vld [vmem:[%s0 + $0x10] sm:$0xff]
  %v84 = vld [vmem:[%s0 + $0x18] sm:$0xff]
  %85 = vmatpush.msra.mxu0 %v77
  %86 = vmatpush.msra.mxu0 %v73
  %87 = vmatpush.msra.mxu0 %v69
  %88 = vmatpush.msra.mxu0 %v65
  %89 = vmatpush.msra.mxu0 %v61
  %90 = vmatpush.msra.mxu0 %v57
  %91 = vmatpush.msra.mxu0 %v53
  %92 = vmatpush.msra.mxu0 %v49
  %93 = vmatpush.msra.mxu0 %v45
  %94 = vmatpush.msra.mxu0 %v41
  %95 = vmatpush.msra.mxu0 %v37
  %96 = vmatpush.msra.mxu0 %v33
  %97 = vmatpush.msra.mxu0 %v29
  %98 = vmatpush.msra.mxu0 %v25
  %99 = vmatpush.msra.mxu0 %v21
  %100 = vmatpush.msra.mxu0 %v17
  %101 = vmatmul.f32.gmra.mxu0 0.0
  %v102 = vpop.f32.mrf.mxu0
  %v103 = vadd.f32 0.0, %v102
  %104 = vdwg.mxu0
  %105 = vmatpush.msra.mxu0 %v78
  %106 = vmatpush.msra.mxu0 %v74
  %107 = vmatpush.msra.mxu0 %v70
  %108 = vmatpush.msra.mxu0 %v66
  %109 = vmatpush.msra.mxu0 %v62
  %110 = vmatpush.msra.mxu0 %v58
  %111 = vmatpush.msra.mxu0 %v54
  %112 = vmatpush.msra.mxu0 %v50
  %113 = vmatpush.msra.mxu0 %v46
  %114 = vmatpush.msra.mxu0 %v42
  %115 = vmatpush.msra.mxu0 %v38
  %116 = vmatpush.msra.mxu0 %v34
  %117 = vmatpush.msra.mxu0 %v30
  %118 = vmatpush.msra.mxu0 %v26
  %119 = vmatpush.msra.mxu0 %v22
  %120 = vmatpush.msra.mxu0 %v18
  %121 = vmatmul.f32.gmra.mxu0 0.0
  %v122 = vpop.f32.mrf.mxu0
  %v123 = vadd.f32 0.0, %v122
  %124 = vdwg.mxu0
  %125 = vmatpush.msra.mxu0 %v79
  %126 = vmatpush.msra.mxu0 %v75
  %127 = vmatpush.msra.mxu0 %v71
  %128 = vmatpush.msra.mxu0 %v67
  %129 = vmatpush.msra.mxu0 %v63
  %130 = vmatpush.msra.mxu0 %v59
  %131 = vmatpush.msra.mxu0 %v55
  %132 = vmatpush.msra.mxu0 %v51
  %133 = vmatpush.msra.mxu0 %v47
  %134 = vmatpush.msra.mxu0 %v43
  %135 = vmatpush.msra.mxu0 %v39
  %136 = vmatpush.msra.mxu0 %v35
  %137 = vmatpush.msra.mxu0 %v31
  %138 = vmatpush.msra.mxu0 %v27
  %139 = vmatpush.msra.mxu0 %v23
  %140 = vmatpush.msra.mxu0 %v19
  %141 = vmatmul.f32.gmra.mxu0 0.0
  %v142 = vpop.f32.mrf.mxu0
  %v143 = vadd.f32 0.0, %v142
  %144 = vdwg.mxu0
  %145 = vmatpush.msra.mxu0 %v80
  %146 = vmatpush.msra.mxu0 %v76
  %147 = vmatpush.msra.mxu0 %v72
  %148 = vmatpush.msra.mxu0 %v68
  %149 = vmatpush.msra.mxu0 %v64
  %150 = vmatpush.msra.mxu0 %v60
  %151 = vmatpush.msra.mxu0 %v56
  %152 = vmatpush.msra.mxu0 %v52
  %153 = vmatpush.msra.mxu0 %v48
  %154 = vmatpush.msra.mxu0 %v44
  %155 = vmatpush.msra.mxu0 %v40
  %156 = vmatpush.msra.mxu0 %v36
  %157 = vmatpush.msra.mxu0 %v32
  %158 = vmatpush.msra.mxu0 %v28
  %159 = vmatpush.msra.mxu0 %v24
  %160 = vmatpush.msra.mxu0 %v20
  %161 = vmatmul.f32.gmra.mxu0 0.0
  %v162 = vpop.f32.mrf.mxu0
  %v163 = vadd.f32 0.0, %v162
  %164 = vdwg.mxu0
  %v165 = vadd.f32 %v81, %v103
  %v166 = vadd.f32 %v82, %v123
  %v167 = vadd.f32 %v83, %v143
  %v168 = vadd.f32 %v84, %v163
  %v169 = vxor.u32 %v165, 2147483648
  %v170 = vxor.u32 %v166, 2147483648
  %v171 = vxor.u32 %v167, 2147483648
  %v172 = vmul.f32 %v169, 1.442695
  %v173 = vpow.pop %v172
  %v174 = vmul.f32 %v170, 1.442695
  %v175 = vpow.pop %v174
  %v176 = vmul.f32 %v171, 1.442695
  %v177 = vpow.pop %v176
  %v178 = vadd.f32 %v173, 1.0
  %v179 = vadd.f32 %v175, 1.0
  %v180 = vadd.f32 %v177, 1.0
  %v181 = vrcp.pop %v178
  %v182 = vmul.f32 %v178, %v181
  %v183 = vsub.f32 1.0, %v182
  %v184 = vmul.f32 %v181, %v183
  %v185 = vadd.f32 %v181, %v184
  %vm186 = vweird.f32 %v178
  %vm187 = vweird.f32 %v181
  %vm188 = vmor %vm186, %vm187
  %v189 = vsel %vm188, %v181, %v185
  %v190 = vand.u32 2147483647, %v178
  %vm191 = vcmp.eq.f32.partialorder %v190, 8.507059e+37
  %v192 = vand.u32 %v178, 2147483648
  %v193 = vor.u32 1.1754944e-38, %v192
  %v194 = vsel %vm191, %v193, %v189
  %v195 = vmul.f32 1.0, %v194
  %v196 = vrcp.pop %v179
  %v197 = vmul.f32 %v179, %v196
  %v198 = vsub.f32 1.0, %v197
  %v199 = vmul.f32 %v196, %v198
  %v200 = vadd.f32 %v196, %v199
  %vm201 = vweird.f32 %v179
  %vm202 = vweird.f32 %v196
  %vm203 = vmor %vm201, %vm202
  %v204 = vsel %vm203, %v196, %v200
  %v205 = vand.u32 2147483647, %v179
  %vm206 = vcmp.eq.f32.partialorder %v205, 8.507059e+37
  %v207 = vand.u32 %v179, 2147483648
  %v208 = vor.u32 1.1754944e-38, %v207
  %v209 = vsel %vm206, %v208, %v204
  %v210 = vmul.f32 1.0, %v209
  %v211 = vrcp.pop %v180
  %v212 = vmul.f32 %v180, %v211
  %v213 = vsub.f32 1.0, %v212
  %v214 = vmul.f32 %v211, %v213
  %v215 = vadd.f32 %v211, %v214
  %vm216 = vweird.f32 %v180
  %vm217 = vweird.f32 %v211
  %vm218 = vmor %vm216, %vm217
  %v219 = vsel %vm218, %v211, %v215
  %v220 = vand.u32 2147483647, %v180
  %vm221 = vcmp.eq.f32.partialorder %v220, 8.507059e+37
  %v222 = vand.u32 %v180, 2147483648
  %v223 = vor.u32 1.1754944e-38, %v222
  %v224 = vsel %vm221, %v223, %v219
  %v225 = vmul.f32 1.0, %v224
  %v226 = vtanh.pop %v168
  %v227 = vmul.f32 %v210, 0.0
  %v228 = vmul.f32 %v195, %v226
  %v229 = vadd.f32 %v227, %v228
  %v230 = vtanh.pop %v229
  %v231 = vmul.f32 %v225, %v230
  %s232 = scalar_lea.vmem %s0, 32
  %v233 = vld [vmem:[%s232] sm:$0xff]
  %v234 = vld [vmem:[%s232 + $0x8] sm:$0xff]
  %v235 = vld [vmem:[%s232 + $0x10] sm:$0xff]
  %v236 = vld [vmem:[%s232 + $0x18] sm:$0xff]
  %237 = vmatpush.msra.mxu0 %v77
  %238 = vmatpush.msra.mxu0 %v73
  %239 = vmatpush.msra.mxu0 %v69
  %240 = vmatpush.msra.mxu0 %v65
  %241 = vmatpush.msra.mxu0 %v61
  %242 = vmatpush.msra.mxu0 %v57
  %243 = vmatpush.msra.mxu0 %v53
  %244 = vmatpush.msra.mxu0 %v49
  %245 = vmatpush.msra.mxu0 %v45
  %246 = vmatpush.msra.mxu0 %v41
  %247 = vmatpush.msra.mxu0 %v37
  %248 = vmatpush.msra.mxu0 %v33
  %249 = vmatpush.msra.mxu0 %v29
  %250 = vmatpush.msra.mxu0 %v25
  %251 = vmatpush.msra.mxu0 %v21
  %252 = vmatpush.msra.mxu0 %v17
  %253 = vmatmul.f32.gmra.mxu0 %v231
  %v254 = vpop.f32.mrf.mxu0
  %v255 = vadd.f32 0.0, %v254
  %256 = vdwg.mxu0
  %257 = vmatpush.msra.mxu0 %v78
  %258 = vmatpush.msra.mxu0 %v74
  %259 = vmatpush.msra.mxu0 %v70
  %260 = vmatpush.msra.mxu0 %v66
  %261 = vmatpush.msra.mxu0 %v62
  %262 = vmatpush.msra.mxu0 %v58
  %263 = vmatpush.msra.mxu0 %v54
  %264 = vmatpush.msra.mxu0 %v50
  %265 = vmatpush.msra.mxu0 %v46
  %266 = vmatpush.msra.mxu0 %v42
  %267 = vmatpush.msra.mxu0 %v38
  %268 = vmatpush.msra.mxu0 %v34
  %269 = vmatpush.msra.mxu0 %v30
  %270 = vmatpush.msra.mxu0 %v26
  %271 = vmatpush.msra.mxu0 %v22
  %272 = vmatpush.msra.mxu0 %v18
  %273 = vmatmul.f32.gmra.mxu0 %v231
  %v274 = vpop.f32.mrf.mxu0
  %v275 = vadd.f32 0.0, %v274
  %276 = vdwg.mxu0
  %277 = vmatpush.msra.mxu0 %v79
  %278 = vmatpush.msra.mxu0 %v75
  %279 = vmatpush.msra.mxu0 %v71
  %280 = vmatpush.msra.mxu0 %v67
  %281 = vmatpush.msra.mxu0 %v63
  %282 = vmatpush.msra.mxu0 %v59
  %283 = vmatpush.msra.mxu0 %v55
  %284 = vmatpush.msra.mxu0 %v51
  %285 = vmatpush.msra.mxu0 %v47
  %286 = vmatpush.msra.mxu0 %v43
  %287 = vmatpush.msra.mxu0 %v39
  %288 = vmatpush.msra.mxu0 %v35
  %289 = vmatpush.msra.mxu0 %v31
  %290 = vmatpush.msra.mxu0 %v27
  %291 = vmatpush.msra.mxu0 %v23
  %292 = vmatpush.msra.mxu0 %v19
  %293 = vmatmul.f32.gmra.mxu0 %v231
  %v294 = vpop.f32.mrf.mxu0
  %v295 = vadd.f32 0.0, %v294
  %296 = vdwg.mxu0
  %297 = vmatpush.msra.mxu0 %v80
  %298 = vmatpush.msra.mxu0 %v76
  %299 = vmatpush.msra.mxu0 %v72
  %300 = vmatpush.msra.mxu0 %v68
  %301 = vmatpush.msra.mxu0 %v64
  %302 = vmatpush.msra.mxu0 %v60
  %303 = vmatpush.msra.mxu0 %v56
  %304 = vmatpush.msra.mxu0 %v52
  %305 = vmatpush.msra.mxu0 %v48
  %306 = vmatpush.msra.mxu0 %v44
  %307 = vmatpush.msra.mxu0 %v40
  %308 = vmatpush.msra.mxu0 %v36
  %309 = vmatpush.msra.mxu0 %v32
  %310 = vmatpush.msra.mxu0 %v28
  %311 = vmatpush.msra.mxu0 %v24
  %312 = vmatpush.msra.mxu0 %v20
  %313 = vmatmul.f32.gmra.mxu0 %v231
  %v314 = vpop.f32.mrf.mxu0
  %v315 = vadd.f32 0.0, %v314
  %316 = vdwg.mxu0
  %v317 = vadd.f32 %v233, %v255
  %v318 = vadd.f32 %v234, %v275
  %v319 = vadd.f32 %v235, %v295
  %v320 = vadd.f32 %v236, %v315
  %v321 = vxor.u32 %v317, 2147483648
  %v322 = vxor.u32 %v318, 2147483648
  %v323 = vxor.u32 %v319, 2147483648
  %v324 = vmul.f32 %v321, 1.442695
  %v325 = vpow.pop %v324
  %v326 = vmul.f32 %v322, 1.442695
  %v327 = vpow.pop %v326
  %v328 = vmul.f32 %v323, 1.442695
  %v329 = vpow.pop %v328
  %v330 = vadd.f32 %v325, 1.0
  %v331 = vadd.f32 %v327, 1.0
  %v332 = vadd.f32 %v329, 1.0
  %v333 = vrcp.pop %v330
  %v334 = vmul.f32 %v330, %v333
  %v335 = vsub.f32 1.0, %v334
  %v336 = vmul.f32 %v333, %v335
  %v337 = vadd.f32 %v333, %v336
  %vm338 = vweird.f32 %v330
  %vm339 = vweird.f32 %v333
  %vm340 = vmor %vm338, %vm339
  %v341 = vsel %vm340, %v333, %v337
  %v342 = vand.u32 2147483647, %v330
  %vm343 = vcmp.eq.f32.partialorder %v342, 8.507059e+37
  %v344 = vand.u32 %v330, 2147483648
  %v345 = vor.u32 1.1754944e-38, %v344
  %v346 = vsel %vm343, %v345, %v341
  %v347 = vmul.f32 1.0, %v346
  %v348 = vrcp.pop %v331
  %v349 = vmul.f32 %v331, %v348
  %v350 = vsub.f32 1.0, %v349
  %v351 = vmul.f32 %v348, %v350
  %v352 = vadd.f32 %v348, %v351
  %vm353 = vweird.f32 %v331
  %vm354 = vweird.f32 %v348
  %vm355 = vmor %vm353, %vm354
  %v356 = vsel %vm355, %v348, %v352
  %v357 = vand.u32 2147483647, %v331
  %vm358 = vcmp.eq.f32.partialorder %v357, 8.507059e+37
  %v359 = vand.u32 %v331, 2147483648
  %v360 = vor.u32 1.1754944e-38, %v359
  %v361 = vsel %vm358, %v360, %v356
  %v362 = vmul.f32 1.0, %v361
  %v363 = vrcp.pop %v332
  %v364 = vmul.f32 %v332, %v363
  %v365 = vsub.f32 1.0, %v364
  %v366 = vmul.f32 %v363, %v365
  %v367 = vadd.f32 %v363, %v366
  %vm368 = vweird.f32 %v332
  %vm369 = vweird.f32 %v363
  %vm370 = vmor %vm368, %vm369
  %v371 = vsel %vm370, %v363, %v367
  %v372 = vand.u32 2147483647, %v332
  %vm373 = vcmp.eq.f32.partialorder %v372, 8.507059e+37
  %v374 = vand.u32 %v332, 2147483648
  %v375 = vor.u32 1.1754944e-38, %v374
  %v376 = vsel %vm373, %v375, %v371
  %v377 = vmul.f32 1.0, %v376
  %v378 = vtanh.pop %v320
  %v379 = vmul.f32 %v362, %v229
  %v380 = vmul.f32 %v347, %v378
  %v381 = vadd.f32 %v379, %v380
  %v382 = vtanh.pop %v381
  %v383 = vmul.f32 %v377, %v382
  %s384 = scalar_lea.vmem %s0, 64
  %v385 = vld [vmem:[%s384] sm:$0xff]
  %v386 = vld [vmem:[%s384 + $0x8] sm:$0xff]
  %v387 = vld [vmem:[%s384 + $0x10] sm:$0xff]
  %v388 = vld [vmem:[%s384 + $0x18] sm:$0xff]
  %389 = vmatpush.msra.mxu0 %v77
  %390 = vmatpush.msra.mxu0 %v73
  %391 = vmatpush.msra.mxu0 %v69
  %392 = vmatpush.msra.mxu0 %v65
  %393 = vmatpush.msra.mxu0 %v61
  %394 = vmatpush.msra.mxu0 %v57
  %395 = vmatpush.msra.mxu0 %v53
  %396 = vmatpush.msra.mxu0 %v49
  %397 = vmatpush.msra.mxu0 %v45
  %398 = vmatpush.msra.mxu0 %v41
  %399 = vmatpush.msra.mxu0 %v37
  %400 = vmatpush.msra.mxu0 %v33
  %401 = vmatpush.msra.mxu0 %v29
  %402 = vmatpush.msra.mxu0 %v25
  %403 = vmatpush.msra.mxu0 %v21
  %404 = vmatpush.msra.mxu0 %v17
  %405 = vmatmul.f32.gmra.mxu0 %v383
  %v406 = vpop.f32.mrf.mxu0
  %v407 = vadd.f32 0.0, %v406
  %408 = vdwg.mxu0
  %409 = vmatpush.msra.mxu0 %v78
  %410 = vmatpush.msra.mxu0 %v74
  %411 = vmatpush.msra.mxu0 %v70
  %412 = vmatpush.msra.mxu0 %v66
  %413 = vmatpush.msra.mxu0 %v62
  %414 = vmatpush.msra.mxu0 %v58
  %415 = vmatpush.msra.mxu0 %v54
  %416 = vmatpush.msra.mxu0 %v50
  %417 = vmatpush.msra.mxu0 %v46
  %418 = vmatpush.msra.mxu0 %v42
  %419 = vmatpush.msra.mxu0 %v38
  %420 = vmatpush.msra.mxu0 %v34
  %421 = vmatpush.msra.mxu0 %v30
  %422 = vmatpush.msra.mxu0 %v26
  %423 = vmatpush.msra.mxu0 %v22
  %424 = vmatpush.msra.mxu0 %v18
  %425 = vmatmul.f32.gmra.mxu0 %v383
  %v426 = vpop.f32.mrf.mxu0
  %v427 = vadd.f32 0.0, %v426
  %428 = vdwg.mxu0
  %429 = vmatpush.msra.mxu0 %v79
  %430 = vmatpush.msra.mxu0 %v75
  %431 = vmatpush.msra.mxu0 %v71
  %432 = vmatpush.msra.mxu0 %v67
  %433 = vmatpush.msra.mxu0 %v63
  %434 = vmatpush.msra.mxu0 %v59
  %435 = vmatpush.msra.mxu0 %v55
  %436 = vmatpush.msra.mxu0 %v51
  %437 = vmatpush.msra.mxu0 %v47
  %438 = vmatpush.msra.mxu0 %v43
  %439 = vmatpush.msra.mxu0 %v39
  %440 = vmatpush.msra.mxu0 %v35
  %441 = vmatpush.msra.mxu0 %v31
  %442 = vmatpush.msra.mxu0 %v27
  %443 = vmatpush.msra.mxu0 %v23
  %444 = vmatpush.msra.mxu0 %v19
  %445 = vmatmul.f32.gmra.mxu0 %v383
  %v446 = vpop.f32.mrf.mxu0
  %v447 = vadd.f32 0.0, %v446
  %448 = vdwg.mxu0
  %449 = vmatpush.msra.mxu0 %v80
  %450 = vmatpush.msra.mxu0 %v76
  %451 = vmatpush.msra.mxu0 %v72
  %452 = vmatpush.msra.mxu0 %v68
  %453 = vmatpush.msra.mxu0 %v64
  %454 = vmatpush.msra.mxu0 %v60
  %455 = vmatpush.msra.mxu0 %v56
  %456 = vmatpush.msra.mxu0 %v52
  %457 = vmatpush.msra.mxu0 %v48
  %458 = vmatpush.msra.mxu0 %v44
  %459 = vmatpush.msra.mxu0 %v40
  %460 = vmatpush.msra.mxu0 %v36
  %461 = vmatpush.msra.mxu0 %v32
  %462 = vmatpush.msra.mxu0 %v28
  %463 = vmatpush.msra.mxu0 %v24
  %464 = vmatpush.msra.mxu0 %v20
  %465 = vmatmul.f32.gmra.mxu0 %v383
  %v466 = vpop.f32.mrf.mxu0
  %v467 = vadd.f32 0.0, %v466
  %468 = vdwg.mxu0
  %v469 = vadd.f32 %v385, %v407
  %v470 = vadd.f32 %v386, %v427
  %v471 = vadd.f32 %v387, %v447
  %v472 = vadd.f32 %v388, %v467
  %v473 = vxor.u32 %v469, 2147483648
  %v474 = vxor.u32 %v470, 2147483648
  %v475 = vxor.u32 %v471, 2147483648
  %v476 = vmul.f32 %v473, 1.442695
  %v477 = vpow.pop %v476
  %v478 = vmul.f32 %v474, 1.442695
  %v479 = vpow.pop %v478
  %v480 = vmul.f32 %v475, 1.442695
  %v481 = vpow.pop %v480
  %v482 = vadd.f32 %v477, 1.0
  %v483 = vadd.f32 %v479, 1.0
  %v484 = vadd.f32 %v481, 1.0
  %v485 = vrcp.pop %v482
  %v486 = vmul.f32 %v482, %v485
  %v487 = vsub.f32 1.0, %v486
  %v488 = vmul.f32 %v485, %v487
  %v489 = vadd.f32 %v485, %v488
  %vm490 = vweird.f32 %v482
  %vm491 = vweird.f32 %v485
  %vm492 = vmor %vm490, %vm491
  %v493 = vsel %vm492, %v485, %v489
  %v494 = vand.u32 2147483647, %v482
  %vm495 = vcmp.eq.f32.partialorder %v494, 8.507059e+37
  %v496 = vand.u32 %v482, 2147483648
  %v497 = vor.u32 1.1754944e-38, %v496
  %v498 = vsel %vm495, %v497, %v493
  %v499 = vmul.f32 1.0, %v498
  %v500 = vrcp.pop %v483
  %v501 = vmul.f32 %v483, %v500
  %v502 = vsub.f32 1.0, %v501
  %v503 = vmul.f32 %v500, %v502
  %v504 = vadd.f32 %v500, %v503
  %vm505 = vweird.f32 %v483
  %vm506 = vweird.f32 %v500
  %vm507 = vmor %vm505, %vm506
  %v508 = vsel %vm507, %v500, %v504
  %v509 = vand.u32 2147483647, %v483
  %vm510 = vcmp.eq.f32.partialorder %v509, 8.507059e+37
  %v511 = vand.u32 %v483, 2147483648
  %v512 = vor.u32 1.1754944e-38, %v511
  %v513 = vsel %vm510, %v512, %v508
  %v514 = vmul.f32 1.0, %v513
  %v515 = vrcp.pop %v484
  %v516 = vmul.f32 %v484, %v515
  %v517 = vsub.f32 1.0, %v516
  %v518 = vmul.f32 %v515, %v517
  %v519 = vadd.f32 %v515, %v518
  %vm520 = vweird.f32 %v484
  %vm521 = vweird.f32 %v515
  %vm522 = vmor %vm520, %vm521
  %v523 = vsel %vm522, %v515, %v519
  %v524 = vand.u32 2147483647, %v484
  %vm525 = vcmp.eq.f32.partialorder %v524, 8.507059e+37
  %v526 = vand.u32 %v484, 2147483648
  %v527 = vor.u32 1.1754944e-38, %v526
  %v528 = vsel %vm525, %v527, %v523
  %v529 = vmul.f32 1.0, %v528
  %v530 = vtanh.pop %v472
  %v531 = vmul.f32 %v514, %v381
  %v532 = vmul.f32 %v499, %v530
  %v533 = vadd.f32 %v531, %v532
  %v534 = vtanh.pop %v533
  %v535 = vmul.f32 %v529, %v534
  %s536 = scalar_lea.vmem %s0, 96
  %v537 = vld [vmem:[%s536] sm:$0xff]
  %v538 = vld [vmem:[%s536 + $0x8] sm:$0xff]
  %v539 = vld [vmem:[%s536 + $0x10] sm:$0xff]
  %v540 = vld [vmem:[%s536 + $0x18] sm:$0xff]
  %541 = vmatpush.msra.mxu0 %v77
  %542 = vmatpush.msra.mxu0 %v73
  %543 = vmatpush.msra.mxu0 %v69
  %544 = vmatpush.msra.mxu0 %v65
  %545 = vmatpush.msra.mxu0 %v61
  %546 = vmatpush.msra.mxu0 %v57
  %547 = vmatpush.msra.mxu0 %v53
  %548 = vmatpush.msra.mxu0 %v49
  %549 = vmatpush.msra.mxu0 %v45
  %550 = vmatpush.msra.mxu0 %v41
  %551 = vmatpush.msra.mxu0 %v37
  %552 = vmatpush.msra.mxu0 %v33
  %553 = vmatpush.msra.mxu0 %v29
  %554 = vmatpush.msra.mxu0 %v25
  %555 = vmatpush.msra.mxu0 %v21
  %556 = vmatpush.msra.mxu0 %v17
  %557 = vmatmul.f32.gmra.mxu0 %v535
  %v558 = vpop.f32.mrf.mxu0
  %v559 = vadd.f32 0.0, %v558
  %560 = vdwg.mxu0
  %561 = vmatpush.msra.mxu0 %v78
  %562 = vmatpush.msra.mxu0 %v74
  %563 = vmatpush.msra.mxu0 %v70
  %564 = vmatpush.msra.mxu0 %v66
  %565 = vmatpush.msra.mxu0 %v62
  %566 = vmatpush.msra.mxu0 %v58
  %567 = vmatpush.msra.mxu0 %v54
  %568 = vmatpush.msra.mxu0 %v50
  %569 = vmatpush.msra.mxu0 %v46
  %570 = vmatpush.msra.mxu0 %v42
  %571 = vmatpush.msra.mxu0 %v38
  %572 = vmatpush.msra.mxu0 %v34
  %573 = vmatpush.msra.mxu0 %v30
  %574 = vmatpush.msra.mxu0 %v26
  %575 = vmatpush.msra.mxu0 %v22
  %576 = vmatpush.msra.mxu0 %v18
  %577 = vmatmul.f32.gmra.mxu0 %v535
  %v578 = vpop.f32.mrf.mxu0
  %v579 = vadd.f32 0.0, %v578
  %580 = vdwg.mxu0
  %581 = vmatpush.msra.mxu0 %v79
  %582 = vmatpush.msra.mxu0 %v75
  %583 = vmatpush.msra.mxu0 %v71
  %584 = vmatpush.msra.mxu0 %v67
  %585 = vmatpush.msra.mxu0 %v63
  %586 = vmatpush.msra.mxu0 %v59
  %587 = vmatpush.msra.mxu0 %v55
  %588 = vmatpush.msra.mxu0 %v51
  %589 = vmatpush.msra.mxu0 %v47
  %590 = vmatpush.msra.mxu0 %v43
  %591 = vmatpush.msra.mxu0 %v39
  %592 = vmatpush.msra.mxu0 %v35
  %593 = vmatpush.msra.mxu0 %v31
  %594 = vmatpush.msra.mxu0 %v27
  %595 = vmatpush.msra.mxu0 %v23
  %596 = vmatpush.msra.mxu0 %v19
  %597 = vmatmul.f32.gmra.mxu0 %v535
  %v598 = vpop.f32.mrf.mxu0
  %v599 = vadd.f32 0.0, %v598
  %600 = vdwg.mxu0
  %601 = vmatpush.msra.mxu0 %v80
  %602 = vmatpush.msra.mxu0 %v76
  %603 = vmatpush.msra.mxu0 %v72
  %604 = vmatpush.msra.mxu0 %v68
  %605 = vmatpush.msra.mxu0 %v64
  %606 = vmatpush.msra.mxu0 %v60
  %607 = vmatpush.msra.mxu0 %v56
  %608 = vmatpush.msra.mxu0 %v52
  %609 = vmatpush.msra.mxu0 %v48
  %610 = vmatpush.msra.mxu0 %v44
  %611 = vmatpush.msra.mxu0 %v40
  %612 = vmatpush.msra.mxu0 %v36
  %613 = vmatpush.msra.mxu0 %v32
  %614 = vmatpush.msra.mxu0 %v28
  %615 = vmatpush.msra.mxu0 %v24
  %616 = vmatpush.msra.mxu0 %v20
  %617 = vmatmul.f32.gmra.mxu0 %v535
  %v618 = vpop.f32.mrf.mxu0
  %v619 = vadd.f32 0.0, %v618
  %620 = vdwg.mxu0
  %v621 = vadd.f32 %v537, %v559
  %v622 = vadd.f32 %v538, %v579
  %v623 = vadd.f32 %v539, %v599
  %v624 = vadd.f32 %v540, %v619
  %v625 = vxor.u32 %v621, 2147483648
  %v626 = vxor.u32 %v622, 2147483648
  %v627 = vxor.u32 %v623, 2147483648
  %v628 = vmul.f32 %v625, 1.442695
  %v629 = vpow.pop %v628
  %v630 = vmul.f32 %v626, 1.442695
  %v631 = vpow.pop %v630
  %v632 = vmul.f32 %v627, 1.442695
  %v633 = vpow.pop %v632
  %v634 = vadd.f32 %v629, 1.0
  %v635 = vadd.f32 %v631, 1.0
  %v636 = vadd.f32 %v633, 1.0
  %v637 = vrcp.pop %v634
  %v638 = vmul.f32 %v634, %v637
  %v639 = vsub.f32 1.0, %v638
  %v640 = vmul.f32 %v637, %v639
  %v641 = vadd.f32 %v637, %v640
  %vm642 = vweird.f32 %v634
  %vm643 = vweird.f32 %v637
  %vm644 = vmor %vm642, %vm643
  %v645 = vsel %vm644, %v637, %v641
  %v646 = vand.u32 2147483647, %v634
  %vm647 = vcmp.eq.f32.partialorder %v646, 8.507059e+37
  %v648 = vand.u32 %v634, 2147483648
  %v649 = vor.u32 1.1754944e-38, %v648
  %v650 = vsel %vm647, %v649, %v645
  %v651 = vmul.f32 1.0, %v650
  %v652 = vrcp.pop %v635
  %v653 = vmul.f32 %v635, %v652
  %v654 = vsub.f32 1.0, %v653
  %v655 = vmul.f32 %v652, %v654
  %v656 = vadd.f32 %v652, %v655
  %vm657 = vweird.f32 %v635
  %vm658 = vweird.f32 %v652
  %vm659 = vmor %vm657, %vm658
  %v660 = vsel %vm659, %v652, %v656
  %v661 = vand.u32 2147483647, %v635
  %vm662 = vcmp.eq.f32.partialorder %v661, 8.507059e+37
  %v663 = vand.u32 %v635, 2147483648
  %v664 = vor.u32 1.1754944e-38, %v663
  %v665 = vsel %vm662, %v664, %v660
  %v666 = vmul.f32 1.0, %v665
  %v667 = vrcp.pop %v636
  %v668 = vmul.f32 %v636, %v667
  %v669 = vsub.f32 1.0, %v668
  %v670 = vmul.f32 %v667, %v669
  %v671 = vadd.f32 %v667, %v670
  %vm672 = vweird.f32 %v636
  %vm673 = vweird.f32 %v667
  %vm674 = vmor %vm672, %vm673
  %v675 = vsel %vm674, %v667, %v671
  %v676 = vand.u32 2147483647, %v636
  %vm677 = vcmp.eq.f32.partialorder %v676, 8.507059e+37
  %v678 = vand.u32 %v636, 2147483648
  %v679 = vor.u32 1.1754944e-38, %v678
  %v680 = vsel %vm677, %v679, %v675
  %v681 = vmul.f32 1.0, %v680
  %v682 = vtanh.pop %v624
  %v683 = vmul.f32 %v666, %v533
  %v684 = vmul.f32 %v651, %v682
  %v685 = vadd.f32 %v683, %v684
  %v686 = vtanh.pop %v685
  %v687 = vmul.f32 %v681, %v686
  %s688 = scalar_lea.vmem %s0, 128
  %v689 = vld [vmem:[%s688] sm:$0xff]
  %v690 = vld [vmem:[%s688 + $0x8] sm:$0xff]
  %v691 = vld [vmem:[%s688 + $0x10] sm:$0xff]
  %v692 = vld [vmem:[%s688 + $0x18] sm:$0xff]
  %693 = vmatpush.msra.mxu0 %v77
  %694 = vmatpush.msra.mxu0 %v73
  %695 = vmatpush.msra.mxu0 %v69
  %696 = vmatpush.msra.mxu0 %v65
  %697 = vmatpush.msra.mxu0 %v61
  %698 = vmatpush.msra.mxu0 %v57
  %699 = vmatpush.msra.mxu0 %v53
  %700 = vmatpush.msra.mxu0 %v49
  %701 = vmatpush.msra.mxu0 %v45
  %702 = vmatpush.msra.mxu0 %v41
  %703 = vmatpush.msra.mxu0 %v37
  %704 = vmatpush.msra.mxu0 %v33
  %705 = vmatpush.msra.mxu0 %v29
  %706 = vmatpush.msra.mxu0 %v25
  %707 = vmatpush.msra.mxu0 %v21
  %708 = vmatpush.msra.mxu0 %v17
  %709 = vmatmul.f32.gmra.mxu0 %v687
  %v710 = vpop.f32.mrf.mxu0
  %v711 = vadd.f32 0.0, %v710
  %712 = vdwg.mxu0
  %713 = vmatpush.msra.mxu0 %v78
  %714 = vmatpush.msra.mxu0 %v74
  %715 = vmatpush.msra.mxu0 %v70
  %716 = vmatpush.msra.mxu0 %v66
  %717 = vmatpush.msra.mxu0 %v62
  %718 = vmatpush.msra.mxu0 %v58
  %719 = vmatpush.msra.mxu0 %v54
  %720 = vmatpush.msra.mxu0 %v50
  %721 = vmatpush.msra.mxu0 %v46
  %722 = vmatpush.msra.mxu0 %v42
  %723 = vmatpush.msra.mxu0 %v38
  %724 = vmatpush.msra.mxu0 %v34
  %725 = vmatpush.msra.mxu0 %v30
  %726 = vmatpush.msra.mxu0 %v26
  %727 = vmatpush.msra.mxu0 %v22
  %728 = vmatpush.msra.mxu0 %v18
  %729 = vmatmul.f32.gmra.mxu0 %v687
  %v730 = vpop.f32.mrf.mxu0
  %v731 = vadd.f32 0.0, %v730
  %732 = vdwg.mxu0
  %733 = vmatpush.msra.mxu0 %v79
  %734 = vmatpush.msra.mxu0 %v75
  %735 = vmatpush.msra.mxu0 %v71
  %736 = vmatpush.msra.mxu0 %v67
  %737 = vmatpush.msra.mxu0 %v63
  %738 = vmatpush.msra.mxu0 %v59
  %739 = vmatpush.msra.mxu0 %v55
  %740 = vmatpush.msra.mxu0 %v51
  %741 = vmatpush.msra.mxu0 %v47
  %742 = vmatpush.msra.mxu0 %v43
  %743 = vmatpush.msra.mxu0 %v39
  %744 = vmatpush.msra.mxu0 %v35
  %745 = vmatpush.msra.mxu0 %v31
  %746 = vmatpush.msra.mxu0 %v27
  %747 = vmatpush.msra.mxu0 %v23
  %748 = vmatpush.msra.mxu0 %v19
  %749 = vmatmul.f32.gmra.mxu0 %v687
  %v750 = vpop.f32.mrf.mxu0
  %v751 = vadd.f32 0.0, %v750
  %752 = vdwg.mxu0
  %753 = vmatpush.msra.mxu0 %v80
  %754 = vmatpush.msra.mxu0 %v76
  %755 = vmatpush.msra.mxu0 %v72
  %756 = vmatpush.msra.mxu0 %v68
  %757 = vmatpush.msra.mxu0 %v64
  %758 = vmatpush.msra.mxu0 %v60
  %759 = vmatpush.msra.mxu0 %v56
  %760 = vmatpush.msra.mxu0 %v52
  %761 = vmatpush.msra.mxu0 %v48
  %762 = vmatpush.msra.mxu0 %v44
  %763 = vmatpush.msra.mxu0 %v40
  %764 = vmatpush.msra.mxu0 %v36
  %765 = vmatpush.msra.mxu0 %v32
  %766 = vmatpush.msra.mxu0 %v28
  %767 = vmatpush.msra.mxu0 %v24
  %768 = vmatpush.msra.mxu0 %v20
  %769 = vmatmul.f32.gmra.mxu0 %v687
  %v770 = vpop.f32.mrf.mxu0
  %v771 = vadd.f32 0.0, %v770
  %772 = vdwg.mxu0
  %v773 = vadd.f32 %v689, %v711
  %v774 = vadd.f32 %v690, %v731
  %v775 = vadd.f32 %v691, %v751
  %v776 = vadd.f32 %v692, %v771
  %v777 = vxor.u32 %v773, 2147483648
  %v778 = vxor.u32 %v774, 2147483648
  %v779 = vxor.u32 %v775, 2147483648
  %v780 = vmul.f32 %v777, 1.442695
  %v781 = vpow.pop %v780
  %v782 = vmul.f32 %v778, 1.442695
  %v783 = vpow.pop %v782
  %v784 = vmul.f32 %v779, 1.442695
  %v785 = vpow.pop %v784
  %v786 = vadd.f32 %v781, 1.0
  %v787 = vadd.f32 %v783, 1.0
  %v788 = vadd.f32 %v785, 1.0
  %v789 = vrcp.pop %v786
  %v790 = vmul.f32 %v786, %v789
  %v791 = vsub.f32 1.0, %v790
  %v792 = vmul.f32 %v789, %v791
  %v793 = vadd.f32 %v789, %v792
  %vm794 = vweird.f32 %v786
  %vm795 = vweird.f32 %v789
  %vm796 = vmor %vm794, %vm795
  %v797 = vsel %vm796, %v789, %v793
  %v798 = vand.u32 2147483647, %v786
  %vm799 = vcmp.eq.f32.partialorder %v798, 8.507059e+37
  %v800 = vand.u32 %v786, 2147483648
  %v801 = vor.u32 1.1754944e-38, %v800
  %v802 = vsel %vm799, %v801, %v797
  %v803 = vmul.f32 1.0, %v802
  %v804 = vrcp.pop %v787
  %v805 = vmul.f32 %v787, %v804
  %v806 = vsub.f32 1.0, %v805
  %v807 = vmul.f32 %v804, %v806
  %v808 = vadd.f32 %v804, %v807
  %vm809 = vweird.f32 %v787
  %vm810 = vweird.f32 %v804
  %vm811 = vmor %vm809, %vm810
  %v812 = vsel %vm811, %v804, %v808
  %v813 = vand.u32 2147483647, %v787
  %vm814 = vcmp.eq.f32.partialorder %v813, 8.507059e+37
  %v815 = vand.u32 %v787, 2147483648
  %v816 = vor.u32 1.1754944e-38, %v815
  %v817 = vsel %vm814, %v816, %v812
  %v818 = vmul.f32 1.0, %v817
  %v819 = vrcp.pop %v788
  %v820 = vmul.f32 %v788, %v819
  %v821 = vsub.f32 1.0, %v820
  %v822 = vmul.f32 %v819, %v821
  %v823 = vadd.f32 %v819, %v822
  %vm824 = vweird.f32 %v788
  %vm825 = vweird.f32 %v819
  %vm826 = vmor %vm824, %vm825
  %v827 = vsel %vm826, %v819, %v823
  %v828 = vand.u32 2147483647, %v788
  %vm829 = vcmp.eq.f32.partialorder %v828, 8.507059e+37
  %v830 = vand.u32 %v788, 2147483648
  %v831 = vor.u32 1.1754944e-38, %v830
  %v832 = vsel %vm829, %v831, %v827
  %v833 = vmul.f32 1.0, %v832
  %v834 = vtanh.pop %v776
  %v835 = vmul.f32 %v818, %v685
  %v836 = vmul.f32 %v803, %v834
  %v837 = vadd.f32 %v835, %v836
  %v838 = vtanh.pop %v837
  %v839 = vmul.f32 %v833, %v838
  %s840 = scalar_lea.vmem %s0, 160
  %v841 = vld [vmem:[%s840] sm:$0xff]
  %v842 = vld [vmem:[%s840 + $0x8] sm:$0xff]
  %v843 = vld [vmem:[%s840 + $0x10] sm:$0xff]
  %v844 = vld [vmem:[%s840 + $0x18] sm:$0xff]
  %845 = vmatpush.msra.mxu0 %v77
  %846 = vmatpush.msra.mxu0 %v73
  %847 = vmatpush.msra.mxu0 %v69
  %848 = vmatpush.msra.mxu0 %v65
  %849 = vmatpush.msra.mxu0 %v61
  %850 = vmatpush.msra.mxu0 %v57
  %851 = vmatpush.msra.mxu0 %v53
  %852 = vmatpush.msra.mxu0 %v49
  %853 = vmatpush.msra.mxu0 %v45
  %854 = vmatpush.msra.mxu0 %v41
  %855 = vmatpush.msra.mxu0 %v37
  %856 = vmatpush.msra.mxu0 %v33
  %857 = vmatpush.msra.mxu0 %v29
  %858 = vmatpush.msra.mxu0 %v25
  %859 = vmatpush.msra.mxu0 %v21
  %860 = vmatpush.msra.mxu0 %v17
  %861 = vmatmul.f32.gmra.mxu0 %v839
  %v862 = vpop.f32.mrf.mxu0
  %v863 = vadd.f32 0.0, %v862
  %864 = vdwg.mxu0
  %865 = vmatpush.msra.mxu0 %v78
  %866 = vmatpush.msra.mxu0 %v74
  %867 = vmatpush.msra.mxu0 %v70
  %868 = vmatpush.msra.mxu0 %v66
  %869 = vmatpush.msra.mxu0 %v62
  %870 = vmatpush.msra.mxu0 %v58
  %871 = vmatpush.msra.mxu0 %v54
  %872 = vmatpush.msra.mxu0 %v50
  %873 = vmatpush.msra.mxu0 %v46
  %874 = vmatpush.msra.mxu0 %v42
  %875 = vmatpush.msra.mxu0 %v38
  %876 = vmatpush.msra.mxu0 %v34
  %877 = vmatpush.msra.mxu0 %v30
  %878 = vmatpush.msra.mxu0 %v26
  %879 = vmatpush.msra.mxu0 %v22
  %880 = vmatpush.msra.mxu0 %v18
  %881 = vmatmul.f32.gmra.mxu0 %v839
  %v882 = vpop.f32.mrf.mxu0
  %v883 = vadd.f32 0.0, %v882
  %884 = vdwg.mxu0
  %885 = vmatpush.msra.mxu0 %v79
  %886 = vmatpush.msra.mxu0 %v75
  %887 = vmatpush.msra.mxu0 %v71
  %888 = vmatpush.msra.mxu0 %v67
  %889 = vmatpush.msra.mxu0 %v63
  %890 = vmatpush.msra.mxu0 %v59
  %891 = vmatpush.msra.mxu0 %v55
  %892 = vmatpush.msra.mxu0 %v51
  %893 = vmatpush.msra.mxu0 %v47
  %894 = vmatpush.msra.mxu0 %v43
  %895 = vmatpush.msra.mxu0 %v39
  %896 = vmatpush.msra.mxu0 %v35
  %897 = vmatpush.msra.mxu0 %v31
  %898 = vmatpush.msra.mxu0 %v27
  %899 = vmatpush.msra.mxu0 %v23
  %900 = vmatpush.msra.mxu0 %v19
  %901 = vmatmul.f32.gmra.mxu0 %v839
  %v902 = vpop.f32.mrf.mxu0
  %v903 = vadd.f32 0.0, %v902
  %904 = vdwg.mxu0
  %905 = vmatpush.msra.mxu0 %v80
  %906 = vmatpush.msra.mxu0 %v76
  %907 = vmatpush.msra.mxu0 %v72
  %908 = vmatpush.msra.mxu0 %v68
  %909 = vmatpush.msra.mxu0 %v64
  %910 = vmatpush.msra.mxu0 %v60
  %911 = vmatpush.msra.mxu0 %v56
  %912 = vmatpush.msra.mxu0 %v52
  %913 = vmatpush.msra.mxu0 %v48
  %914 = vmatpush.msra.mxu0 %v44
  %915 = vmatpush.msra.mxu0 %v40
  %916 = vmatpush.msra.mxu0 %v36
  %917 = vmatpush.msra.mxu0 %v32
  %918 = vmatpush.msra.mxu0 %v28
  %919 = vmatpush.msra.mxu0 %v24
  %920 = vmatpush.msra.mxu0 %v20
  %921 = vmatmul.f32.gmra.mxu0 %v839
  %v922 = vpop.f32.mrf.mxu0
  %v923 = vadd.f32 0.0, %v922
  %924 = vdwg.mxu0
  %v925 = vadd.f32 %v841, %v863
  %v926 = vadd.f32 %v842, %v883
  %v927 = vadd.f32 %v843, %v903
  %v928 = vadd.f32 %v844, %v923
  %v929 = vxor.u32 %v925, 2147483648
  %v930 = vxor.u32 %v926, 2147483648
  %v931 = vxor.u32 %v927, 2147483648
  %v932 = vmul.f32 %v929, 1.442695
  %v933 = vpow.pop %v932
  %v934 = vmul.f32 %v930, 1.442695
  %v935 = vpow.pop %v934
  %v936 = vmul.f32 %v931, 1.442695
  %v937 = vpow.pop %v936
  %v938 = vadd.f32 %v933, 1.0
  %v939 = vadd.f32 %v935, 1.0
  %v940 = vadd.f32 %v937, 1.0
  %v941 = vrcp.pop %v938
  %v942 = vmul.f32 %v938, %v941
  %v943 = vsub.f32 1.0, %v942
  %v944 = vmul.f32 %v941, %v943
  %v945 = vadd.f32 %v941, %v944
  %vm946 = vweird.f32 %v938
  %vm947 = vweird.f32 %v941
  %vm948 = vmor %vm946, %vm947
  %v949 = vsel %vm948, %v941, %v945
  %v950 = vand.u32 2147483647, %v938
  %vm951 = vcmp.eq.f32.partialorder %v950, 8.507059e+37
  %v952 = vand.u32 %v938, 2147483648
  %v953 = vor.u32 1.1754944e-38, %v952
  %v954 = vsel %vm951, %v953, %v949
  %v955 = vmul.f32 1.0, %v954
  %v956 = vrcp.pop %v939
  %v957 = vmul.f32 %v939, %v956
  %v958 = vsub.f32 1.0, %v957
  %v959 = vmul.f32 %v956, %v958
  %v960 = vadd.f32 %v956, %v959
  %vm961 = vweird.f32 %v939
  %vm962 = vweird.f32 %v956
  %vm963 = vmor %vm961, %vm962
  %v964 = vsel %vm963, %v956, %v960
  %v965 = vand.u32 2147483647, %v939
  %vm966 = vcmp.eq.f32.partialorder %v965, 8.507059e+37
  %v967 = vand.u32 %v939, 2147483648
  %v968 = vor.u32 1.1754944e-38, %v967
  %v969 = vsel %vm966, %v968, %v964
  %v970 = vmul.f32 1.0, %v969
  %v971 = vrcp.pop %v940
  %v972 = vmul.f32 %v940, %v971
  %v973 = vsub.f32 1.0, %v972
  %v974 = vmul.f32 %v971, %v973
  %v975 = vadd.f32 %v971, %v974
  %vm976 = vweird.f32 %v940
  %vm977 = vweird.f32 %v971
  %vm978 = vmor %vm976, %vm977
  %v979 = vsel %vm978, %v971, %v975
  %v980 = vand.u32 2147483647, %v940
  %vm981 = vcmp.eq.f32.partialorder %v980, 8.507059e+37
  %v982 = vand.u32 %v940, 2147483648
  %v983 = vor.u32 1.1754944e-38, %v982
  %v984 = vsel %vm981, %v983, %v979
  %v985 = vmul.f32 1.0, %v984
  %v986 = vtanh.pop %v928
  %v987 = vmul.f32 %v970, %v837
  %v988 = vmul.f32 %v955, %v986
  %v989 = vadd.f32 %v987, %v988
  %v990 = vtanh.pop %v989
  %v991 = vmul.f32 %v985, %v990
  %s992 = scalar_lea.vmem %s0, 192
  %v993 = vld [vmem:[%s992] sm:$0xff]
  %v994 = vld [vmem:[%s992 + $0x8] sm:$0xff]
  %v995 = vld [vmem:[%s992 + $0x10] sm:$0xff]
  %v996 = vld [vmem:[%s992 + $0x18] sm:$0xff]
  %997 = vmatpush.msra.mxu0 %v77
  %998 = vmatpush.msra.mxu0 %v73
  %999 = vmatpush.msra.mxu0 %v69
  %1000 = vmatpush.msra.mxu0 %v65
  %1001 = vmatpush.msra.mxu0 %v61
  %1002 = vmatpush.msra.mxu0 %v57
  %1003 = vmatpush.msra.mxu0 %v53
  %1004 = vmatpush.msra.mxu0 %v49
  %1005 = vmatpush.msra.mxu0 %v45
  %1006 = vmatpush.msra.mxu0 %v41
  %1007 = vmatpush.msra.mxu0 %v37
  %1008 = vmatpush.msra.mxu0 %v33
  %1009 = vmatpush.msra.mxu0 %v29
  %1010 = vmatpush.msra.mxu0 %v25
  %1011 = vmatpush.msra.mxu0 %v21
  %1012 = vmatpush.msra.mxu0 %v17
  %1013 = vmatmul.f32.gmra.mxu0 %v991
  %v1014 = vpop.f32.mrf.mxu0
  %v1015 = vadd.f32 0.0, %v1014
  %1016 = vdwg.mxu0
  %1017 = vmatpush.msra.mxu0 %v78
  %1018 = vmatpush.msra.mxu0 %v74
  %1019 = vmatpush.msra.mxu0 %v70
  %1020 = vmatpush.msra.mxu0 %v66
  %1021 = vmatpush.msra.mxu0 %v62
  %1022 = vmatpush.msra.mxu0 %v58
  %1023 = vmatpush.msra.mxu0 %v54
  %1024 = vmatpush.msra.mxu0 %v50
  %1025 = vmatpush.msra.mxu0 %v46
  %1026 = vmatpush.msra.mxu0 %v42
  %1027 = vmatpush.msra.mxu0 %v38
  %1028 = vmatpush.msra.mxu0 %v34
  %1029 = vmatpush.msra.mxu0 %v30
  %1030 = vmatpush.msra.mxu0 %v26
  %1031 = vmatpush.msra.mxu0 %v22
  %1032 = vmatpush.msra.mxu0 %v18
  %1033 = vmatmul.f32.gmra.mxu0 %v991
  %v1034 = vpop.f32.mrf.mxu0
  %v1035 = vadd.f32 0.0, %v1034
  %1036 = vdwg.mxu0
  %1037 = vmatpush.msra.mxu0 %v79
  %1038 = vmatpush.msra.mxu0 %v75
  %1039 = vmatpush.msra.mxu0 %v71
  %1040 = vmatpush.msra.mxu0 %v67
  %1041 = vmatpush.msra.mxu0 %v63
  %1042 = vmatpush.msra.mxu0 %v59
  %1043 = vmatpush.msra.mxu0 %v55
  %1044 = vmatpush.msra.mxu0 %v51
  %1045 = vmatpush.msra.mxu0 %v47
  %1046 = vmatpush.msra.mxu0 %v43
  %1047 = vmatpush.msra.mxu0 %v39
  %1048 = vmatpush.msra.mxu0 %v35
  %1049 = vmatpush.msra.mxu0 %v31
  %1050 = vmatpush.msra.mxu0 %v27
  %1051 = vmatpush.msra.mxu0 %v23
  %1052 = vmatpush.msra.mxu0 %v19
  %1053 = vmatmul.f32.gmra.mxu0 %v991
  %v1054 = vpop.f32.mrf.mxu0
  %v1055 = vadd.f32 0.0, %v1054
  %1056 = vdwg.mxu0
  %1057 = vmatpush.msra.mxu0 %v80
  %1058 = vmatpush.msra.mxu0 %v76
  %1059 = vmatpush.msra.mxu0 %v72
  %1060 = vmatpush.msra.mxu0 %v68
  %1061 = vmatpush.msra.mxu0 %v64
  %1062 = vmatpush.msra.mxu0 %v60
  %1063 = vmatpush.msra.mxu0 %v56
  %1064 = vmatpush.msra.mxu0 %v52
  %1065 = vmatpush.msra.mxu0 %v48
  %1066 = vmatpush.msra.mxu0 %v44
  %1067 = vmatpush.msra.mxu0 %v40
  %1068 = vmatpush.msra.mxu0 %v36
  %1069 = vmatpush.msra.mxu0 %v32
  %1070 = vmatpush.msra.mxu0 %v28
  %1071 = vmatpush.msra.mxu0 %v24
  %1072 = vmatpush.msra.mxu0 %v20
  %1073 = vmatmul.f32.gmra.mxu0 %v991
  %v1074 = vpop.f32.mrf.mxu0
  %v1075 = vadd.f32 0.0, %v1074
  %1076 = vdwg.mxu0
  %v1077 = vadd.f32 %v993, %v1015
  %v1078 = vadd.f32 %v994, %v1035
  %v1079 = vadd.f32 %v995, %v1055
  %v1080 = vadd.f32 %v996, %v1075
  %v1081 = vxor.u32 %v1077, 2147483648
  %v1082 = vxor.u32 %v1078, 2147483648
  %v1083 = vxor.u32 %v1079, 2147483648
  %v1084 = vmul.f32 %v1081, 1.442695
  %v1085 = vpow.pop %v1084
  %v1086 = vmul.f32 %v1082, 1.442695
  %v1087 = vpow.pop %v1086
  %v1088 = vmul.f32 %v1083, 1.442695
  %v1089 = vpow.pop %v1088
  %v1090 = vadd.f32 %v1085, 1.0
  %v1091 = vadd.f32 %v1087, 1.0
  %v1092 = vadd.f32 %v1089, 1.0
  %v1093 = vrcp.pop %v1090
  %v1094 = vmul.f32 %v1090, %v1093
  %v1095 = vsub.f32 1.0, %v1094
  %v1096 = vmul.f32 %v1093, %v1095
  %v1097 = vadd.f32 %v1093, %v1096
  %vm1098 = vweird.f32 %v1090
  %vm1099 = vweird.f32 %v1093
  %vm1100 = vmor %vm1098, %vm1099
  %v1101 = vsel %vm1100, %v1093, %v1097
  %v1102 = vand.u32 2147483647, %v1090
  %vm1103 = vcmp.eq.f32.partialorder %v1102, 8.507059e+37
  %v1104 = vand.u32 %v1090, 2147483648
  %v1105 = vor.u32 1.1754944e-38, %v1104
  %v1106 = vsel %vm1103, %v1105, %v1101
  %v1107 = vmul.f32 1.0, %v1106
  %v1108 = vrcp.pop %v1091
  %v1109 = vmul.f32 %v1091, %v1108
  %v1110 = vsub.f32 1.0, %v1109
  %v1111 = vmul.f32 %v1108, %v1110
  %v1112 = vadd.f32 %v1108, %v1111
  %vm1113 = vweird.f32 %v1091
  %vm1114 = vweird.f32 %v1108
  %vm1115 = vmor %vm1113, %vm1114
  %v1116 = vsel %vm1115, %v1108, %v1112
  %v1117 = vand.u32 2147483647, %v1091
  %vm1118 = vcmp.eq.f32.partialorder %v1117, 8.507059e+37
  %v1119 = vand.u32 %v1091, 2147483648
  %v1120 = vor.u32 1.1754944e-38, %v1119
  %v1121 = vsel %vm1118, %v1120, %v1116
  %v1122 = vmul.f32 1.0, %v1121
  %v1123 = vrcp.pop %v1092
  %v1124 = vmul.f32 %v1092, %v1123
  %v1125 = vsub.f32 1.0, %v1124
  %v1126 = vmul.f32 %v1123, %v1125
  %v1127 = vadd.f32 %v1123, %v1126
  %vm1128 = vweird.f32 %v1092
  %vm1129 = vweird.f32 %v1123
  %vm1130 = vmor %vm1128, %vm1129
  %v1131 = vsel %vm1130, %v1123, %v1127
  %v1132 = vand.u32 2147483647, %v1092
  %vm1133 = vcmp.eq.f32.partialorder %v1132, 8.507059e+37
  %v1134 = vand.u32 %v1092, 2147483648
  %v1135 = vor.u32 1.1754944e-38, %v1134
  %v1136 = vsel %vm1133, %v1135, %v1131
  %v1137 = vmul.f32 1.0, %v1136
  %v1138 = vtanh.pop %v1080
  %v1139 = vmul.f32 %v1122, %v989
  %v1140 = vmul.f32 %v1107, %v1138
  %v1141 = vadd.f32 %v1139, %v1140
  %v1142 = vtanh.pop %v1141
  %v1143 = vmul.f32 %v1137, %v1142
  %s1144 = scalar_lea.vmem %s0, 224
  %v1145 = vld [vmem:[%s1144] sm:$0xff]
  %v1146 = vld [vmem:[%s1144 + $0x8] sm:$0xff]
  %v1147 = vld [vmem:[%s1144 + $0x10] sm:$0xff]
  %v1148 = vld [vmem:[%s1144 + $0x18] sm:$0xff]
  %1149 = vmatpush.msra.mxu0 %v77
  %1150 = vmatpush.msra.mxu0 %v73
  %1151 = vmatpush.msra.mxu0 %v69
  %1152 = vmatpush.msra.mxu0 %v65
  %1153 = vmatpush.msra.mxu0 %v61
  %1154 = vmatpush.msra.mxu0 %v57
  %1155 = vmatpush.msra.mxu0 %v53
  %1156 = vmatpush.msra.mxu0 %v49
  %1157 = vmatpush.msra.mxu0 %v45
  %1158 = vmatpush.msra.mxu0 %v41
  %1159 = vmatpush.msra.mxu0 %v37
  %1160 = vmatpush.msra.mxu0 %v33
  %1161 = vmatpush.msra.mxu0 %v29
  %1162 = vmatpush.msra.mxu0 %v25
  %1163 = vmatpush.msra.mxu0 %v21
  %1164 = vmatpush.msra.mxu0 %v17
  %1165 = vmatmul.f32.gmra.mxu0 %v1143
  %v1166 = vpop.f32.mrf.mxu0
  %v1167 = vadd.f32 0.0, %v1166
  %1168 = vdwg.mxu0
  %1169 = vmatpush.msra.mxu0 %v78
  %1170 = vmatpush.msra.mxu0 %v74
  %1171 = vmatpush.msra.mxu0 %v70
  %1172 = vmatpush.msra.mxu0 %v66
  %1173 = vmatpush.msra.mxu0 %v62
  %1174 = vmatpush.msra.mxu0 %v58
  %1175 = vmatpush.msra.mxu0 %v54
  %1176 = vmatpush.msra.mxu0 %v50
  %1177 = vmatpush.msra.mxu0 %v46
  %1178 = vmatpush.msra.mxu0 %v42
  %1179 = vmatpush.msra.mxu0 %v38
  %1180 = vmatpush.msra.mxu0 %v34
  %1181 = vmatpush.msra.mxu0 %v30
  %1182 = vmatpush.msra.mxu0 %v26
  %1183 = vmatpush.msra.mxu0 %v22
  %1184 = vmatpush.msra.mxu0 %v18
  %1185 = vmatmul.f32.gmra.mxu0 %v1143
  %v1186 = vpop.f32.mrf.mxu0
  %v1187 = vadd.f32 0.0, %v1186
  %1188 = vdwg.mxu0
  %1189 = vmatpush.msra.mxu0 %v79
  %1190 = vmatpush.msra.mxu0 %v75
  %1191 = vmatpush.msra.mxu0 %v71
  %1192 = vmatpush.msra.mxu0 %v67
  %1193 = vmatpush.msra.mxu0 %v63
  %1194 = vmatpush.msra.mxu0 %v59
  %1195 = vmatpush.msra.mxu0 %v55
  %1196 = vmatpush.msra.mxu0 %v51
  %1197 = vmatpush.msra.mxu0 %v47
  %1198 = vmatpush.msra.mxu0 %v43
  %1199 = vmatpush.msra.mxu0 %v39
  %1200 = vmatpush.msra.mxu0 %v35
  %1201 = vmatpush.msra.mxu0 %v31
  %1202 = vmatpush.msra.mxu0 %v27
  %1203 = vmatpush.msra.mxu0 %v23
  %1204 = vmatpush.msra.mxu0 %v19
  %1205 = vmatmul.f32.gmra.mxu0 %v1143
  %v1206 = vpop.f32.mrf.mxu0
  %v1207 = vadd.f32 0.0, %v1206
  %1208 = vdwg.mxu0
  %1209 = vmatpush.msra.mxu0 %v80
  %1210 = vmatpush.msra.mxu0 %v76
  %1211 = vmatpush.msra.mxu0 %v72
  %1212 = vmatpush.msra.mxu0 %v68
  %1213 = vmatpush.msra.mxu0 %v64
  %1214 = vmatpush.msra.mxu0 %v60
  %1215 = vmatpush.msra.mxu0 %v56
  %1216 = vmatpush.msra.mxu0 %v52
  %1217 = vmatpush.msra.mxu0 %v48
  %1218 = vmatpush.msra.mxu0 %v44
  %1219 = vmatpush.msra.mxu0 %v40
  %1220 = vmatpush.msra.mxu0 %v36
  %1221 = vmatpush.msra.mxu0 %v32
  %1222 = vmatpush.msra.mxu0 %v28
  %1223 = vmatpush.msra.mxu0 %v24
  %1224 = vmatpush.msra.mxu0 %v20
  %1225 = vmatmul.f32.gmra.mxu0 %v1143
  %v1226 = vpop.f32.mrf.mxu0
  %v1227 = vadd.f32 0.0, %v1226
  %1228 = vdwg.mxu0
  %v1229 = vadd.f32 %v1145, %v1167
  %v1230 = vadd.f32 %v1146, %v1187
  %v1231 = vadd.f32 %v1147, %v1207
  %v1232 = vadd.f32 %v1148, %v1227
  %v1233 = vxor.u32 %v1229, 2147483648
  %v1234 = vxor.u32 %v1230, 2147483648
  %v1235 = vxor.u32 %v1231, 2147483648
  %v1236 = vmul.f32 %v1233, 1.442695
  %v1237 = vpow.pop %v1236
  %v1238 = vmul.f32 %v1234, 1.442695
  %v1239 = vpow.pop %v1238
  %v1240 = vmul.f32 %v1235, 1.442695
  %v1241 = vpow.pop %v1240
  %v1242 = vadd.f32 %v1237, 1.0
  %v1243 = vadd.f32 %v1239, 1.0
  %v1244 = vadd.f32 %v1241, 1.0
  %v1245 = vrcp.pop %v1242
  %v1246 = vmul.f32 %v1242, %v1245
  %v1247 = vsub.f32 1.0, %v1246
  %v1248 = vmul.f32 %v1245, %v1247
  %v1249 = vadd.f32 %v1245, %v1248
  %vm1250 = vweird.f32 %v1242
  %vm1251 = vweird.f32 %v1245
  %vm1252 = vmor %vm1250, %vm1251
  %v1253 = vsel %vm1252, %v1245, %v1249
  %v1254 = vand.u32 2147483647, %v1242
  %vm1255 = vcmp.eq.f32.partialorder %v1254, 8.507059e+37
  %v1256 = vand.u32 %v1242, 2147483648
  %v1257 = vor.u32 1.1754944e-38, %v1256
  %v1258 = vsel %vm1255, %v1257, %v1253
  %v1259 = vmul.f32 1.0, %v1258
  %v1260 = vrcp.pop %v1243
  %v1261 = vmul.f32 %v1243, %v1260
  %v1262 = vsub.f32 1.0, %v1261
  %v1263 = vmul.f32 %v1260, %v1262
  %v1264 = vadd.f32 %v1260, %v1263
  %vm1265 = vweird.f32 %v1243
  %vm1266 = vweird.f32 %v1260
  %vm1267 = vmor %vm1265, %vm1266
  %v1268 = vsel %vm1267, %v1260, %v1264
  %v1269 = vand.u32 2147483647, %v1243
  %vm1270 = vcmp.eq.f32.partialorder %v1269, 8.507059e+37
  %v1271 = vand.u32 %v1243, 2147483648
  %v1272 = vor.u32 1.1754944e-38, %v1271
  %v1273 = vsel %vm1270, %v1272, %v1268
  %v1274 = vmul.f32 1.0, %v1273
  %v1275 = vrcp.pop %v1244
  %v1276 = vmul.f32 %v1244, %v1275
  %v1277 = vsub.f32 1.0, %v1276
  %v1278 = vmul.f32 %v1275, %v1277
  %v1279 = vadd.f32 %v1275, %v1278
  %vm1280 = vweird.f32 %v1244
  %vm1281 = vweird.f32 %v1275
  %vm1282 = vmor %vm1280, %vm1281
  %v1283 = vsel %vm1282, %v1275, %v1279
  %v1284 = vand.u32 2147483647, %v1244
  %vm1285 = vcmp.eq.f32.partialorder %v1284, 8.507059e+37
  %v1286 = vand.u32 %v1244, 2147483648
  %v1287 = vor.u32 1.1754944e-38, %v1286
  %v1288 = vsel %vm1285, %v1287, %v1283
  %v1289 = vmul.f32 1.0, %v1288
  %v1290 = vtanh.pop %v1232
  %v1291 = vmul.f32 %v1274, %v1141
  %v1292 = vmul.f32 %v1259, %v1290
  %v1293 = vadd.f32 %v1291, %v1292
  %v1294 = vtanh.pop %v1293
  %v1295 = vmul.f32 %v1289, %v1294
  %v1296 = vld [vmem:[%s2] sm:$0xff]
  %v1297 = vld [vmem:[%s2 + $0x8] sm:$0xff]
  %v1298 = vld [vmem:[%s2 + $0x10] sm:$0xff]
  %v1299 = vld [vmem:[%s2 + $0x18] sm:$0xff]
  %v1300 = vld [vmem:[%s2 + $0x20] sm:$0xff]
  %v1301 = vld [vmem:[%s2 + $0x28] sm:$0xff]
  %v1302 = vld [vmem:[%s2 + $0x30] sm:$0xff]
  %v1303 = vld [vmem:[%s2 + $0x38] sm:$0xff]
  %v1304 = vld [vmem:[%s2 + $0x40] sm:$0xff]
  %v1305 = vld [vmem:[%s2 + $0x48] sm:$0xff]
  %v1306 = vld [vmem:[%s2 + $0x50] sm:$0xff]
  %v1307 = vld [vmem:[%s2 + $0x58] sm:$0xff]
  %v1308 = vld [vmem:[%s2 + $0x60] sm:$0xff]
  %v1309 = vld [vmem:[%s2 + $0x68] sm:$0xff]
  %v1310 = vld [vmem:[%s2 + $0x70] sm:$0xff]
  %v1311 = vld [vmem:[%s2 + $0x78] sm:$0xff]
  %v1312 = vld [vmem:[%s3] sm:$0x1]
  %v1314 = vperm.slane %v1312, 0
  %1316 = vmatpush.msra.mxu0 %v1311
  %1317 = vmatpush.msra.mxu0 %v1310
  %1318 = vmatpush.msra.mxu0 %v1309
  %1319 = vmatpush.msra.mxu0 %v1308
  %1320 = vmatpush.msra.mxu0 %v1307
  %1321 = vmatpush.msra.mxu0 %v1306
  %1322 = vmatpush.msra.mxu0 %v1305
  %1323 = vmatpush.msra.mxu0 %v1304
  %1324 = vmatpush.msra.mxu0 %v1303
  %1325 = vmatpush.msra.mxu0 %v1302
  %1326 = vmatpush.msra.mxu0 %v1301
  %1327 = vmatpush.msra.mxu0 %v1300
  %1328 = vmatpush.msra.mxu0 %v1299
  %1329 = vmatpush.msra.mxu0 %v1298
  %1330 = vmatpush.msra.mxu0 %v1297
  %1331 = vmatpush.msra.mxu0 %v1296
  %1332 = vmatmul.f32.gmra.mxu0 %v1295
  %v1333 = vpop.f32.mrf.mxu0
  %v1334 = vadd.f32 %v1314, %v1333
  %1335 = vdwg.mxu0
  %1336 = vst [vmem:[%s4] sm:$0xff] %v1334
  // Predicated region
  $region18: #{rnn_forward.1} parent=0 // pred_check
    _
  $region19: #{rnn_forward.1} parent=0 // pred_check_branch
    %1338 = sbr.rel (0) target = $region21
  $region20: #{rnn_forward.1} parent=0 // pred_region
    _
  $region21: #{rnn_forward.1} parent=0 // pred_fallthru
    _
  // Predicated region
  $region22: #{rnn_forward.1} parent=0 // pred_check
    _
  $region23: #{rnn_forward.1} parent=0 // pred_check_branch
    %1340 = sbr.rel (0) target = $region25
  $region24: #{rnn_forward.1} parent=0 // pred_region
    _
  $region25: #{rnn_forward.1} parent=0 // pred_fallthru
    _

</llo_original>
